<compile_context>
chip_gen: v7x
topology: tpu7x:2x2x1
jax: 0.10.0
libtpu: 0.0.40
codegen_flags: <defaults>
</compile_context>

<pallas_src>
import jax
import jax.numpy as jnp
from jax import lax
from jax.experimental import pallas as pl
from jax.experimental.pallas import tpu as pltpu

OUTPUT_CLASS = 3
_NEG_INF = -1e30
_HP = jax.lax.Precision.HIGHEST


def rnn_model_kernel(maxlen_ref,                       # SMEM (1,) int32 (prefetch)
                     gi0_ref,                          # streamed (TC, Bp, 3H) f32
                     whh0_ref,                         # (H, 3H)   mxu dtype
                     w1_ref,                           # (2H, 4H)  mxu dtype
                     bhh0n_ref,                        # (Bp, H)   f32
                     b1_ref,                           # (Bp, 4H)  f32
                     len_ref, invlen_ref,              # (Bp, 1)
                     wfc_ref, bfc_ref,                 # (2H, C), (1, C)
                     out_ref,                          # (Bp, C)
                     h1_sc, h2_sc, mx_sc, sm_sc):      # (Bp, H) f32 scratch
    step = pl.program_id(0)
    TC = gi0_ref.shape[0]
    Bp, H = h1_sc.shape

    @pl.when(step == 0)
    def _init():
        zeros = jnp.zeros((Bp, H), jnp.float32)
        h1_sc[...] = zeros
        h2_sc[...] = zeros
        sm_sc[...] = zeros
        mx_sc[...] = jnp.full((Bp, H), _NEG_INF, jnp.float32)

    t_base = step * TC

    # Skip fully-padded trailing chunks entirely.
    @pl.when(t_base < maxlen_ref[0])
    def _compute():
        whh0 = whh0_ref[...]                 # (H, 3H)
        w1 = w1_ref[...]                     # (2H, 4H)
        bhh0n = bhh0n_ref[...]               # (Bp, H)
        b1 = b1_ref[...]                     # (Bp, 4H)
        mxu_dt = whh0.dtype
        rem = len_ref[...] - t_base          # (Bp, 1) int32, hoisted

        def body(i, carry):
            h1, h2, mx, sm = carry

            # ---- Layer 0: streamed input proj (biases folded) + ONE fused
            #      recurrent dot (H x 3H). ----
            gi0 = gi0_ref[i]                 # (Bp, 3H) f32
            gh0 = jnp.dot(h1.astype(mxu_dt), whh0,
                          preferred_element_type=jnp.float32)   # (Bp, 3H)
            r0 = jax.nn.sigmoid(gi0[:, :H] + gh0[:, :H])
            z0 = jax.nn.sigmoid(gi0[:, H:2 * H] + gh0[:, H:2 * H])
            n0 = jnp.tanh(gi0[:, 2 * H:] + r0 * (gh0[:, 2 * H:] + bhh0n))
            h1n = (1.0 - z0) * n0 + z0 * h1

            # ---- Layer 1: ONE (Bp,2H) x (2H,4H) dot replaces six dots.
            #      Columns: [r_in+r_h | z_in+z_h | n_in | n_h]. ----
            lhs = jnp.concatenate([h1n, h2], axis=-1)            # (Bp, 2H)
            g1 = jnp.dot(lhs.astype(mxu_dt), w1,
                         preferred_element_type=jnp.float32) + b1  # (Bp, 4H)
            r1 = jax.nn.sigmoid(g1[:, :H])
            z1 = jax.nn.sigmoid(g1[:, H:2 * H])
            n1 = jnp.tanh(g1[:, 2 * H:3 * H] + r1 * g1[:, 3 * H:])
            h2n = (1.0 - z1) * n1 + z1 * h2

            # ---- Masked pooling: timestep valid iff (t_base + i) < length. ----
            valid = i < rem                                       # (Bp, 1) bool
            mx = jnp.where(valid, jnp.maximum(mx, h2n), mx)
            sm = jnp.where(valid, sm + h2n, sm)
            return h1n, h2n, mx, sm

        h1, h2, mx, sm = lax.fori_loop(
            0, TC, body,
            (h1_sc[...], h2_sc[...], mx_sc[...], sm_sc[...]),
            unroll=min(TC, 8))
        h1_sc[...] = h1
        h2_sc[...] = h2
        mx_sc[...] = mx
        sm_sc[...] = sm

    @pl.when(step == pl.num_programs(0) - 1)
    def _finalize():
        avg = sm_sc[...] * invlen_ref[...]
        pooled = jnp.concatenate([mx_sc[...], avg], axis=-1)      # (Bp, 2H)=(8,128)
        logits = jnp.dot(pooled.astype(wfc_ref.dtype), wfc_ref[...],
                         preferred_element_type=jnp.float32) + bfc_ref[...]
        out_ref[...] = logits.astype(out_ref.dtype)


def rnn_model_forward(x, lengths, params, *, time_chunk=32, mxu_dtype=jnp.float32):
    """x: (B, T, F) float32 (PyTorch batch_first), lengths: (B,) int32."""
    B, T, F = x.shape
    H = params["weight_hh_l0"].shape[1]
    C = params["fc_weight"].shape[0]

    Bp = ((B + 7) // 8) * 8                 # pad batch to a sublane multiple
    TC = max(1, min(time_chunk, T))         # time steps per grid step
    Tp = ((T + TC - 1) // TC) * TC          # pad T to a multiple of TC

    xf = x.astype(jnp.float32)
    x_pad = jnp.zeros((Bp, Tp, F), jnp.float32).at[:B, :T].set(xf)
    len_pad = jnp.ones((Bp,), jnp.int32).at[:B].set(lengths.astype(jnp.int32))

    bih0 = params["bias_ih_l0"].astype(jnp.float32)
    bhh0 = params["bias_hh_l0"].astype(jnp.float32)
    bih1 = params["bias_ih_l1"].astype(jnp.float32)
    bhh1 = params["bias_hh_l1"].astype(jnp.float32)

    # --- Layer-0 input projection: one fused (F, 3H) matmul, time-major,
    #     bih0 folded for all gates, bhh0 folded for r/z (n's bhh0 stays
    #     inside the r*(...) term). ---
    wih0_cat = jnp.transpose(params["weight_ih_l0"])           # (F, 3H) [r|z|n]
    bias0_fold = bih0 + jnp.concatenate([bhh0[:2 * H], jnp.zeros((H,), jnp.float32)])
    gi0 = jnp.einsum("btf,fh->tbh", x_pad, wih0_cat, precision=_HP) + bias0_fold

    # --- Layer-0 recurrent weight fused to (H, 3H). ---
    whh0_cat = jnp.transpose(params["weight_hh_l0"]).astype(mxu_dtype)   # (H, 3H)
    bhh0n = jnp.broadcast_to(bhh0[2 * H:], (Bp, H)).astype(jnp.float32)

    # --- Layer-1: single (2H, 4H) weight. Rows 0:H multiply h1n (input path),
    #     rows H:2H multiply h2 (hidden path). Column blocks:
    #     [r_in+r_h | z_in+z_h | n_in | n_h]. ---
    wih1_t = jnp.transpose(params["weight_ih_l1"])             # (H, 3H)
    whh1_t = jnp.transpose(params["weight_hh_l1"])             # (H, 3H)
    zH = jnp.zeros((H, H), jnp.float32)
    top = jnp.concatenate([wih1_t, zH], axis=1)                # (H, 4H)
    bot = jnp.concatenate([whh1_t[:, :2 * H], zH, whh1_t[:, 2 * H:]], axis=1)
    w1_cat = jnp.concatenate([top, bot], axis=0).astype(mxu_dtype)   # (2H, 4H)

    b1_all = jnp.concatenate(
        [bih1[:2 * H] + bhh1[:2 * H], bih1[2 * H:], bhh1[2 * H:]])    # (4H,)
    b1_all = jnp.broadcast_to(b1_all, (Bp, 4 * H)).astype(jnp.float32)

    len_2d = len_pad.reshape(Bp, 1)
    inv_len = (1.0 / jnp.maximum(len_pad.astype(jnp.float32), 1.0)).reshape(Bp, 1)

    wfc = jnp.transpose(params["fc_weight"]).astype(mxu_dtype)  # (2H, C)
    bfc = params["fc_bias"].reshape(1, C).astype(jnp.float32)

    max_len = jnp.max(lengths.astype(jnp.int32)).reshape((1,))  # scalar prefetch

    n_chunks = Tp // TC
    stream_spec = pl.BlockSpec((TC, Bp, 3 * H), lambda t, ml: (t, 0, 0))

    def const_spec(a):
        zeros = (0,) * a.ndim
        return pl.BlockSpec(a.shape, lambda t, ml, _z=zeros: _z)

    consts = (whh0_cat, w1_cat, bhh0n, b1_all, len_2d, inv_len, wfc, bfc)

    out = pl.pallas_call(
        rnn_model_kernel,
        out_shape=jax.ShapeDtypeStruct((Bp, C), jnp.float32),
        grid_spec=pltpu.PrefetchScalarGridSpec(
            num_scalar_prefetch=1,
            grid=(n_chunks,),
            in_specs=[stream_spec] + [const_spec(a) for a in consts],
            out_specs=pl.BlockSpec((Bp, C), lambda t, ml: (0, 0)),
            scratch_shapes=[pltpu.VMEM((Bp, H), jnp.float32)] * 4,
        ),
        compiler_params=pltpu.CompilerParams(
            dimension_semantics=("arbitrary",),   # serial recurrence over time
            vmem_limit_bytes=32 * 1024 * 1024,    # safe on v7x's 64 MiB VMEM too
        ),
    )(max_len, gi0, *consts)

    return out[:B]


def make_params(key, feature_size, hidden_size, output_class):
    """Deterministic params in PyTorch nn.GRU / nn.Linear layout (gate order r,z,n)."""
    H = hidden_size
    k = 1.0 / jnp.sqrt(jnp.float32(H))
    ks = jax.random.split(key, 10)

    def u(kk, shape):
        return jax.random.uniform(kk, shape, jnp.float32, -k, k)

    return dict(
        weight_ih_l0=u(ks[0], (3 * H, feature_size)),
        weight_hh_l0=u(ks[1], (3 * H, H)),
        bias_ih_l0=u(ks[2], (3 * H,)),
        bias_hh_l0=u(ks[3], (3 * H,)),
        weight_ih_l1=u(ks[4], (3 * H, H)),
        weight_hh_l1=u(ks[5], (3 * H, H)),
        bias_ih_l1=u(ks[6], (3 * H,)),
        bias_hh_l1=u(ks[7], (3 * H,)),
        fc_weight=u(ks[8], (output_class, 2 * H)),
        fc_bias=u(ks[9], (output_class,)),
    )


def reference_forward(x, lengths, params):
    """Pure-JAX reference of the same forward pass (eval-mode dropout)."""
    B, T, F = x.shape
    H = params["weight_hh_l0"].shape[1]

    def cell(x_t, h, w_ih, w_hh, b_ih, b_hh):
        gi = jnp.dot(x_t, w_ih.T, precision=_HP) + b_ih
        gh = jnp.dot(h, w_hh.T, precision=_HP) + b_hh
        r = jax.nn.sigmoid(gi[:, :H] + gh[:, :H])
        z = jax.nn.sigmoid(gi[:, H:2 * H] + gh[:, H:2 * H])
        n = jnp.tanh(gi[:, 2 * H:] + r * gh[:, 2 * H:])
        return (1.0 - z) * n + z * h

    h1 = jnp.zeros((B, H), jnp.float32)
    h2 = jnp.zeros((B, H), jnp.float32)
    outs = []
    for t in range(T):
        h1 = cell(x[:, t], h1, params["weight_ih_l0"], params["weight_hh_l0"],
                  params["bias_ih_l0"], params["bias_hh_l0"])
        h2 = cell(h1, h2, params["weight_ih_l1"], params["weight_hh_l1"],
                  params["bias_ih_l1"], params["bias_hh_l1"])
        outs.append(h2)
    outs = jnp.stack(outs, axis=1)  # (B, T, H)
    mask = jnp.arange(T)[None, :] < lengths[:, None]
    mx = jnp.max(jnp.where(mask[:, :, None], outs, _NEG_INF), axis=1)
    avg = (jnp.sum(jnp.where(mask[:, :, None], outs, 0.0), axis=1)
           / lengths[:, None].astype(jnp.float32))
    pooled = jnp.concatenate([mx, avg], axis=1)
    return jnp.dot(pooled, params["fc_weight"].T, precision=_HP) + params["fc_bias"]


if __name__ == "__main__":
    feature_size = 16
    hidden_size = 64          # module default hidden_size
    batch = 2
    seq_len = 8

    key = jax.random.PRNGKey(0)
    k_x, k_p = jax.random.split(key)

    x = jax.random.normal(k_x, (batch, seq_len, feature_size), jnp.float32)
    lengths = jnp.array([seq_len, 5], dtype=jnp.int32)
    params = make_params(k_p, feature_size, hidden_size, OUTPUT_CLASS)

    ref = reference_forward(x, lengths, params)

    # f32 MXU operands: bit-faithful (tight tolerance).
    out = rnn_model_forward(x, lengths, params)
    out = jax.block_until_ready(out)
    assert out.shape == (batch, OUTPUT_CLASS)
    assert jnp.allclose(out, ref, atol=2e-3, rtol=2e-3), (out, ref)

    # bf16 MXU operands (v6e/v7x-native throughput): deliberately wider tolerance.
    out_bf16 = rnn_model_forward(x, lengths, params, mxu_dtype=jnp.bfloat16)
    out_bf16 = jax.block_until_ready(out_bf16)
    assert jnp.allclose(out_bf16, ref, atol=1e-1, rtol=1e-1), (out_bf16, ref)

    print("KERNEL_OK")
</pallas_src>

<mosaic_0001>
module attributes {stable_mosaic.version = 11 : i64} {
  func.func @rnn_model_kernel(%arg0: i32, %arg1: memref<1xi32, #tpu.memory_space<smem>>, %arg2: memref<8x8x192xf32, #tpu.memory_space<vmem>>, %arg3: memref<64x192xf32, #tpu.memory_space<vmem>>, %arg4: memref<128x256xf32, #tpu.memory_space<vmem>>, %arg5: memref<8x64xf32, #tpu.memory_space<vmem>>, %arg6: memref<8x256xf32, #tpu.memory_space<vmem>>, %arg7: memref<8x1xi32, #tpu.memory_space<vmem>>, %arg8: memref<8x1xf32, #tpu.memory_space<vmem>>, %arg9: memref<128x3xf32, #tpu.memory_space<vmem>>, %arg10: memref<1x3xf32, #tpu.memory_space<vmem>>, %arg11: memref<8x3xf32, #tpu.memory_space<vmem>>, %arg12: memref<8x64xf32, #tpu.memory_space<vmem>>, %arg13: memref<8x64xf32, #tpu.memory_space<vmem>>, %arg14: memref<8x64xf32, #tpu.memory_space<vmem>>, %arg15: memref<8x64xf32, #tpu.memory_space<vmem>>) attributes {dimension_semantics = [#tpu.dimension_semantics<arbitrary>], iteration_bounds = array<i64: 1>, scalar_prefetch = 1 : i64, scratch_operands = 4 : i64, tpu.core_type = #tpu.core_type<tc>, window_params = [{transform_indices = @transform_0, window_bounds = array<i64: 8, 8, 192>}, {pipeline_mode = #tpu.pipeline_mode<synchronous>, transform_indices = @transform_1, window_bounds = array<i64: 64, 192>}, {pipeline_mode = #tpu.pipeline_mode<synchronous>, transform_indices = @transform_2, window_bounds = array<i64: 128, 256>}, {pipeline_mode = #tpu.pipeline_mode<synchronous>, transform_indices = @transform_3, window_bounds = array<i64: 8, 64>}, {pipeline_mode = #tpu.pipeline_mode<synchronous>, transform_indices = @transform_4, window_bounds = array<i64: 8, 256>}, {pipeline_mode = #tpu.pipeline_mode<synchronous>, transform_indices = @transform_5, window_bounds = array<i64: 8, 1>}, {pipeline_mode = #tpu.pipeline_mode<synchronous>, transform_indices = @transform_6, window_bounds = array<i64: 8, 1>}, {pipeline_mode = #tpu.pipeline_mode<synchronous>, transform_indices = @transform_7, window_bounds = array<i64: 128, 3>}, {pipeline_mode = #tpu.pipeline_mode<synchronous>, transform_indices = @transform_8, window_bounds = array<i64: 1, 3>}, {pipeline_mode = #tpu.pipeline_mode<synchronous>, transform_indices = @transform_9, window_bounds = array<i64: 8, 3>}]} {
    %c0_i32 = arith.constant 0 : i32
    %0 = arith.cmpi eq, %arg0, %c0_i32 : i32
    %1 = arith.extui %0 : i1 to i32
    %c0_i32_0 = arith.constant 0 : i32
    %2 = arith.cmpi ne, %1, %c0_i32_0 : i32
    scf.if %2 {
      %cst = arith.constant 0.000000e+00 : f32
      %11 = vector.broadcast %cst : f32 to vector<8x64xf32>
      %c0_4 = arith.constant 0 : index
      %c0_5 = arith.constant 0 : index
      %12 = vector.load %arg12[%c0_4, %c0_5] : memref<8x64xf32, #tpu.memory_space<vmem>>, vector<8x64xf32>
      tpu.vector_store %arg12[%c0_4, %c0_5], %11 {strides = array<i32>} : memref<8x64xf32, #tpu.memory_space<vmem>>, vector<8x64xf32>,
      %c0_6 = arith.constant 0 : index
      %c0_7 = arith.constant 0 : index
      %13 = vector.load %arg13[%c0_6, %c0_7] : memref<8x64xf32, #tpu.memory_space<vmem>>, vector<8x64xf32>
      tpu.vector_store %arg13[%c0_6, %c0_7], %11 {strides = array<i32>} : memref<8x64xf32, #tpu.memory_space<vmem>>, vector<8x64xf32>,
      %c0_8 = arith.constant 0 : index
      %c0_9 = arith.constant 0 : index
      %14 = vector.load %arg15[%c0_8, %c0_9] : memref<8x64xf32, #tpu.memory_space<vmem>>, vector<8x64xf32>
      tpu.vector_store %arg15[%c0_8, %c0_9], %11 {strides = array<i32>} : memref<8x64xf32, #tpu.memory_space<vmem>>, vector<8x64xf32>,
      %cst_10 = arith.constant -1.000000e+30 : f32
      %15 = vector.broadcast %cst_10 : f32 to vector<8x64xf32>
      %c0_11 = arith.constant 0 : index
      %c0_12 = arith.constant 0 : index
      %16 = vector.load %arg14[%c0_11, %c0_12] : memref<8x64xf32, #tpu.memory_space<vmem>>, vector<8x64xf32>
      tpu.vector_store %arg14[%c0_11, %c0_12], %15 {strides = array<i32>} : memref<8x64xf32, #tpu.memory_space<vmem>>, vector<8x64xf32>,
    } else {
    }
    %c8_i32 = arith.constant 8 : i32
    %3 = arith.muli %arg0, %c8_i32 : i32
    %c0 = arith.constant 0 : index
    %4 = memref.load %arg1[%c0] : memref<1xi32, #tpu.memory_space<smem>>
    %5 = arith.cmpi slt, %3, %4 : i32
    %6 = arith.extui %5 : i1 to i32
    %c0_i32_1 = arith.constant 0 : i32
    %7 = arith.cmpi ne, %6, %c0_i32_1 : i32
    scf.if %7 {
      %c0_4 = arith.constant 0 : index
      %c0_5 = arith.constant 0 : index
      %11 = vector.load %arg3[%c0_4, %c0_5] : memref<64x192xf32, #tpu.memory_space<vmem>>, vector<64x192xf32>
      %c0_6 = arith.constant 0 : index
      %c0_7 = arith.constant 0 : index
      %12 = vector.load %arg4[%c0_6, %c0_7] : memref<128x256xf32, #tpu.memory_space<vmem>>, vector<128x256xf32>
      %c0_8 = arith.constant 0 : index
      %c0_9 = arith.constant 0 : index
      %13 = vector.load %arg5[%c0_8, %c0_9] : memref<8x64xf32, #tpu.memory_space<vmem>>, vector<8x64xf32>
      %c0_10 = arith.constant 0 : index
      %c0_11 = arith.constant 0 : index
      %14 = vector.load %arg6[%c0_10, %c0_11] : memref<8x256xf32, #tpu.memory_space<vmem>>, vector<8x256xf32>
      %c0_12 = arith.constant 0 : index
      %c0_13 = arith.constant 0 : index
      %15 = vector.load %arg7[%c0_12, %c0_13] : memref<8x1xi32, #tpu.memory_space<vmem>>, vector<8x1xi32>
      %16 = vector.broadcast %3 : i32 to vector<8x1xi32>
      %17 = arith.subi %15, %16 : vector<8x1xi32>
      %c0_14 = arith.constant 0 : index
      %c0_15 = arith.constant 0 : index
      %18 = vector.load %arg12[%c0_14, %c0_15] : memref<8x64xf32, #tpu.memory_space<vmem>>, vector<8x64xf32>
      %c0_16 = arith.constant 0 : index
      %c0_17 = arith.constant 0 : index
      %19 = vector.load %arg13[%c0_16, %c0_17] : memref<8x64xf32, #tpu.memory_space<vmem>>, vector<8x64xf32>
      %c0_18 = arith.constant 0 : index
      %c0_19 = arith.constant 0 : index
      %20 = vector.load %arg14[%c0_18, %c0_19] : memref<8x64xf32, #tpu.memory_space<vmem>>, vector<8x64xf32>
      %c0_20 = arith.constant 0 : index
      %c0_21 = arith.constant 0 : index
      %21 = vector.load %arg15[%c0_20, %c0_21] : memref<8x64xf32, #tpu.memory_space<vmem>>, vector<8x64xf32>
      %c0_i32_22 = arith.constant 0 : i32
      %22 = arith.index_cast %c0_i32_22 : i32 to index
      %c0_23 = arith.constant 0 : index
      %c0_24 = arith.constant 0 : index
      %23 = vector.load %arg2[%22, %c0_23, %c0_24] : memref<8x8x192xf32, #tpu.memory_space<vmem>>, vector<1x8x192xf32>
      %24 = vector.shape_cast %23 : vector<1x8x192xf32> to vector<8x192xf32>
      %cst = arith.constant dense<0.000000e+00> : vector<8x192xf32>
      %25 = tpu.matmul %18, %11, %cst {dimension_numbers = #tpu.dot_dimension_numbers<[1], [0], [0], [1], [0, 0, 1, 1], [], []>} : vector<8x64xf32>, vector<64x192xf32>, vector<8x192xf32> -> vector<8x192xf32>
      %26 = vector.extract_strided_slice %24 {offsets = [0, 0], sizes = [8, 64], strides = [1, 1]} : vector<8x192xf32> to vector<8x64xf32>
      %27 = vector.extract_strided_slice %25 {offsets = [0, 0], sizes = [8, 64], strides = [1, 1]} : vector<8x192xf32> to vector<8x64xf32>
      %28 = arith.addf %26, %27 : vector<8x64xf32>
      %29 = arith.negf %28 : vector<8x64xf32>
      %30 = math.exp %29 : vector<8x64xf32>
      %cst_25 = arith.constant 1.000000e+00 : f32
      %31 = vector.broadcast %cst_25 : f32 to vector<8x64xf32>
      %32 = arith.addf %31, %30 : vector<8x64xf32>
      %33 = arith.divf %31, %32 : vector<8x64xf32>
      %34 = vector.extract_strided_slice %24 {offsets = [0, 64], sizes = [8, 64], strides = [1, 1]} : vector<8x192xf32> to vector<8x64xf32>
      %35 = vector.extract_strided_slice %25 {offsets = [0, 64], sizes = [8, 64], strides = [1, 1]} : vector<8x192xf32> to vector<8x64xf32>
      %36 = arith.addf %34, %35 : vector<8x64xf32>
      %37 = arith.negf %36 : vector<8x64xf32>
      %38 = math.exp %37 : vector<8x64xf32>
      %cst_26 = arith.constant 1.000000e+00 : f32
      %39 = vector.broadcast %cst_26 : f32 to vector<8x64xf32>
      %40 = arith.addf %39, %38 : vector<8x64xf32>
      %41 = arith.divf %39, %40 : vector<8x64xf32>
      %42 = vector.extract_strided_slice %24 {offsets = [0, 128], sizes = [8, 64], strides = [1, 1]} : vector<8x192xf32> to vector<8x64xf32>
      %43 = vector.extract_strided_slice %25 {offsets = [0, 128], sizes = [8, 64], strides = [1, 1]} : vector<8x192xf32> to vector<8x64xf32>
      %44 = arith.addf %43, %13 : vector<8x64xf32>
      %45 = arith.mulf %33, %44 : vector<8x64xf32>
      %46 = arith.addf %42, %45 : vector<8x64xf32>
      %47 = math.tanh %46 : vector<8x64xf32>
      %cst_27 = arith.constant 1.000000e+00 : f32
      %48 = vector.broadcast %cst_27 : f32 to vector<8x64xf32>
      %49 = arith.subf %48, %41 : vector<8x64xf32>
      %50 = arith.mulf %49, %47 : vector<8x64xf32>
      %51 = arith.mulf %41, %18 : vector<8x64xf32>
      %52 = arith.addf %50, %51 : vector<8x64xf32>
      %53 = tpu.concatenate %52, %19 in 1 : vector<8x64xf32>, vector<8x64xf32> -> vector<8x128xf32>
      %cst_28 = arith.constant dense<0.000000e+00> : vector<8x256xf32>
      %54 = tpu.matmul %53, %12, %cst_28 {dimension_numbers = #tpu.dot_dimension_numbers<[1], [0], [0], [1], [0, 0, 1, 1], [], []>} : vector<8x128xf32>, vector<128x256xf32>, vector<8x256xf32> -> vector<8x256xf32>
      %55 = arith.addf %54, %14 : vector<8x256xf32>
      %56 = vector.extract_strided_slice %55 {offsets = [0, 0], sizes = [8, 64], strides = [1, 1]} : vector<8x256xf32> to vector<8x64xf32>
      %57 = arith.negf %56 : vector<8x64xf32>
      %58 = math.exp %57 : vector<8x64xf32>
      %cst_29 = arith.constant 1.000000e+00 : f32
      %59 = vector.broadcast %cst_29 : f32 to vector<8x64xf32>
      %60 = arith.addf %59, %58 : vector<8x64xf32>
      %61 = arith.divf %59, %60 : vector<8x64xf32>
      %62 = vector.extract_strided_slice %55 {offsets = [0, 64], sizes = [8, 64], strides = [1, 1]} : vector<8x256xf32> to vector<8x64xf32>
      %63 = arith.negf %62 : vector<8x64xf32>
      %64 = math.exp %63 : vector<8x64xf32>
      %cst_30 = arith.constant 1.000000e+00 : f32
      %65 = vector.broadcast %cst_30 : f32 to vector<8x64xf32>
      %66 = arith.addf %65, %64 : vector<8x64xf32>
      %67 = arith.divf %65, %66 : vector<8x64xf32>
      %68 = vector.extract_strided_slice %55 {offsets = [0, 128], sizes = [8, 64], strides = [1, 1]} : vector<8x256xf32> to vector<8x64xf32>
      %69 = vector.extract_strided_slice %55 {offsets = [0, 192], sizes = [8, 64], strides = [1, 1]} : vector<8x256xf32> to vector<8x64xf32>
      %70 = arith.mulf %61, %69 : vector<8x64xf32>
      %71 = arith.addf %68, %70 : vector<8x64xf32>
      %72 = math.tanh %71 : vector<8x64xf32>
      %cst_31 = arith.constant 1.000000e+00 : f32
      %73 = vector.broadcast %cst_31 : f32 to vector<8x64xf32>
      %74 = arith.subf %73, %67 : vector<8x64xf32>
      %75 = arith.mulf %74, %72 : vector<8x64xf32>
      %76 = arith.mulf %67, %19 : vector<8x64xf32>
      %77 = arith.addf %75, %76 : vector<8x64xf32>
      %78 = vector.broadcast %c0_i32_22 : i32 to vector<8x1xi32>
      %79 = arith.cmpi slt, %78, %17 : vector<8x1xi32>
      %80 = arith.maximumf %20, %77 : vector<8x64xf32>
      %81 = vector.shape_cast %79 : vector<8x1xi1> to vector<8x1xi1>
      %82 = vector.broadcast %81 : vector<8x1xi1> to vector<8x64xi1>
      %83 = arith.select %82, %80, %20 : vector<8x64xi1>, vector<8x64xf32>
      %84 = arith.addf %21, %77 : vector<8x64xf32>
      %85 = vector.shape_cast %79 : vector<8x1xi1> to vector<8x1xi1>
      %86 = vector.broadcast %85 : vector<8x1xi1> to vector<8x64xi1>
      %87 = arith.select %86, %84, %21 : vector<8x64xi1>, vector<8x64xf32>
      %c1_i32 = arith.constant 1 : i32
      %88 = arith.index_cast %c1_i32 : i32 to index
      %c0_32 = arith.constant 0 : index
      %c0_33 = arith.constant 0 : index
      %89 = vector.load %arg2[%88, %c0_32, %c0_33] : memref<8x8x192xf32, #tpu.memory_space<vmem>>, vector<1x8x192xf32>
      %90 = vector.shape_cast %89 : vector<1x8x192xf32> to vector<8x192xf32>
      %cst_34 = arith.constant dense<0.000000e+00> : vector<8x192xf32>
      %91 = tpu.matmul %52, %11, %cst_34 {dimension_numbers = #tpu.dot_dimension_numbers<[1], [0], [0], [1], [0, 0, 1, 1], [], []>} : vector<8x64xf32>, vector<64x192xf32>, vector<8x192xf32> -> vector<8x192xf32>
      %92 = vector.extract_strided_slice %90 {offsets = [0, 0], sizes = [8, 64], strides = [1, 1]} : vector<8x192xf32> to vector<8x64xf32>
      %93 = vector.extract_strided_slice %91 {offsets = [0, 0], sizes = [8, 64], strides = [1, 1]} : vector<8x192xf32> to vector<8x64xf32>
      %94 = arith.addf %92, %93 : vector<8x64xf32>
      %95 = arith.negf %94 : vector<8x64xf32>
      %96 = math.exp %95 : vector<8x64xf32>
      %cst_35 = arith.constant 1.000000e+00 : f32
      %97 = vector.broadcast %cst_35 : f32 to vector<8x64xf32>
      %98 = arith.addf %97, %96 : vector<8x64xf32>
      %99 = arith.divf %97, %98 : vector<8x64xf32>
      %100 = vector.extract_strided_slice %90 {offsets = [0, 64], sizes = [8, 64], strides = [1, 1]} : vector<8x192xf32> to vector<8x64xf32>
      %101 = vector.extract_strided_slice %91 {offsets = [0, 64], sizes = [8, 64], strides = [1, 1]} : vector<8x192xf32> to vector<8x64xf32>
      %102 = arith.addf %100, %101 : vector<8x64xf32>
      %103 = arith.negf %102 : vector<8x64xf32>
      %104 = math.exp %103 : vector<8x64xf32>
      %cst_36 = arith.constant 1.000000e+00 : f32
      %105 = vector.broadcast %cst_36 : f32 to vector<8x64xf32>
      %106 = arith.addf %105, %104 : vector<8x64xf32>
      %107 = arith.divf %105, %106 : vector<8x64xf32>
      %108 = vector.extract_strided_slice %90 {offsets = [0, 128], sizes = [8, 64], strides = [1, 1]} : vector<8x192xf32> to vector<8x64xf32>
      %109 = vector.extract_strided_slice %91 {offsets = [0, 128], sizes = [8, 64], strides = [1, 1]} : vector<8x192xf32> to vector<8x64xf32>
      %110 = arith.addf %109, %13 : vector<8x64xf32>
      %111 = arith.mulf %99, %110 : vector<8x64xf32>
      %112 = arith.addf %108, %111 : vector<8x64xf32>
      %113 = math.tanh %112 : vector<8x64xf32>
      %cst_37 = arith.constant 1.000000e+00 : f32
      %114 = vector.broadcast %cst_37 : f32 to vector<8x64xf32>
      %115 = arith.subf %114, %107 : vector<8x64xf32>
      %116 = arith.mulf %115, %113 : vector<8x64xf32>
      %117 = arith.mulf %107, %52 : vector<8x64xf32>
      %118 = arith.addf %116, %117 : vector<8x64xf32>
      %119 = tpu.concatenate %118, %77 in 1 : vector<8x64xf32>, vector<8x64xf32> -> vector<8x128xf32>
      %cst_38 = arith.constant dense<0.000000e+00> : vector<8x256xf32>
      %120 = tpu.matmul %119, %12, %cst_38 {dimension_numbers = #tpu.dot_dimension_numbers<[1], [0], [0], [1], [0, 0, 1, 1], [], []>} : vector<8x128xf32>, vector<128x256xf32>, vector<8x256xf32> -> vector<8x256xf32>
      %121 = arith.addf %120, %14 : vector<8x256xf32>
      %122 = vector.extract_strided_slice %121 {offsets = [0, 0], sizes = [8, 64], strides = [1, 1]} : vector<8x256xf32> to vector<8x64xf32>
      %123 = arith.negf %122 : vector<8x64xf32>
      %124 = math.exp %123 : vector<8x64xf32>
      %cst_39 = arith.constant 1.000000e+00 : f32
      %125 = vector.broadcast %cst_39 : f32 to vector<8x64xf32>
      %126 = arith.addf %125, %124 : vector<8x64xf32>
      %127 = arith.divf %125, %126 : vector<8x64xf32>
      %128 = vector.extract_strided_slice %121 {offsets = [0, 64], sizes = [8, 64], strides = [1, 1]} : vector<8x256xf32> to vector<8x64xf32>
      %129 = arith.negf %128 : vector<8x64xf32>
      %130 = math.exp %129 : vector<8x64xf32>
      %cst_40 = arith.constant 1.000000e+00 : f32
      %131 = vector.broadcast %cst_40 : f32 to vector<8x64xf32>
      %132 = arith.addf %131, %130 : vector<8x64xf32>
      %133 = arith.divf %131, %132 : vector<8x64xf32>
      %134 = vector.extract_strided_slice %121 {offsets = [0, 128], sizes = [8, 64], strides = [1, 1]} : vector<8x256xf32> to vector<8x64xf32>
      %135 = vector.extract_strided_slice %121 {offsets = [0, 192], sizes = [8, 64], strides = [1, 1]} : vector<8x256xf32> to vector<8x64xf32>
      %136 = arith.mulf %127, %135 : vector<8x64xf32>
      %137 = arith.addf %134, %136 : vector<8x64xf32>
      %138 = math.tanh %137 : vector<8x64xf32>
      %cst_41 = arith.constant 1.000000e+00 : f32
      %139 = vector.broadcast %cst_41 : f32 to vector<8x64xf32>
      %140 = arith.subf %139, %133 : vector<8x64xf32>
      %141 = arith.mulf %140, %138 : vector<8x64xf32>
      %142 = arith.mulf %133, %77 : vector<8x64xf32>
      %143 = arith.addf %141, %142 : vector<8x64xf32>
      %144 = vector.broadcast %c1_i32 : i32 to vector<8x1xi32>
      %145 = arith.cmpi slt, %144, %17 : vector<8x1xi32>
      %146 = arith.maximumf %83, %143 : vector<8x64xf32>
      %147 = vector.shape_cast %145 : vector<8x1xi1> to vector<8x1xi1>
      %148 = vector.broadcast %147 : vector<8x1xi1> to vector<8x64xi1>
      %149 = arith.select %148, %146, %83 : vector<8x64xi1>, vector<8x64xf32>
      %150 = arith.addf %87, %143 : vector<8x64xf32>
      %151 = vector.shape_cast %145 : vector<8x1xi1> to vector<8x1xi1>
      %152 = vector.broadcast %151 : vector<8x1xi1> to vector<8x64xi1>
      %153 = arith.select %152, %150, %87 : vector<8x64xi1>, vector<8x64xf32>
      %c2_i32 = arith.constant 2 : i32
      %154 = arith.index_cast %c2_i32 : i32 to index
      %c0_42 = arith.constant 0 : index
      %c0_43 = arith.constant 0 : index
      %155 = vector.load %arg2[%154, %c0_42, %c0_43] : memref<8x8x192xf32, #tpu.memory_space<vmem>>, vector<1x8x192xf32>
      %156 = vector.shape_cast %155 : vector<1x8x192xf32> to vector<8x192xf32>
      %cst_44 = arith.constant dense<0.000000e+00> : vector<8x192xf32>
      %157 = tpu.matmul %118, %11, %cst_44 {dimension_numbers = #tpu.dot_dimension_numbers<[1], [0], [0], [1], [0, 0, 1, 1], [], []>} : vector<8x64xf32>, vector<64x192xf32>, vector<8x192xf32> -> vector<8x192xf32>
      %158 = vector.extract_strided_slice %156 {offsets = [0, 0], sizes = [8, 64], strides = [1, 1]} : vector<8x192xf32> to vector<8x64xf32>
      %159 = vector.extract_strided_slice %157 {offsets = [0, 0], sizes = [8, 64], strides = [1, 1]} : vector<8x192xf32> to vector<8x64xf32>
      %160 = arith.addf %158, %159 : vector<8x64xf32>
      %161 = arith.negf %160 : vector<8x64xf32>
      %162 = math.exp %161 : vector<8x64xf32>
      %cst_45 = arith.constant 1.000000e+00 : f32
      %163 = vector.broadcast %cst_45 : f32 to vector<8x64xf32>
      %164 = arith.addf %163, %162 : vector<8x64xf32>
      %165 = arith.divf %163, %164 : vector<8x64xf32>
      %166 = vector.extract_strided_slice %156 {offsets = [0, 64], sizes = [8, 64], strides = [1, 1]} : vector<8x192xf32> to vector<8x64xf32>
      %167 = vector.extract_strided_slice %157 {offsets = [0, 64], sizes = [8, 64], strides = [1, 1]} : vector<8x192xf32> to vector<8x64xf32>
      %168 = arith.addf %166, %167 : vector<8x64xf32>
      %169 = arith.negf %168 : vector<8x64xf32>
      %170 = math.exp %169 : vector<8x64xf32>
      %cst_46 = arith.constant 1.000000e+00 : f32
      %171 = vector.broadcast %cst_46 : f32 to vector<8x64xf32>
      %172 = arith.addf %171, %170 : vector<8x64xf32>
      %173 = arith.divf %171, %172 : vector<8x64xf32>
      %174 = vector.extract_strided_slice %156 {offsets = [0, 128], sizes = [8, 64], strides = [1, 1]} : vector<8x192xf32> to vector<8x64xf32>
      %175 = vector.extract_strided_slice %157 {offsets = [0, 128], sizes = [8, 64], strides = [1, 1]} : vector<8x192xf32> to vector<8x64xf32>
      %176 = arith.addf %175, %13 : vector<8x64xf32>
      %177 = arith.mulf %165, %176 : vector<8x64xf32>
      %178 = arith.addf %174, %177 : vector<8x64xf32>
      %179 = math.tanh %178 : vector<8x64xf32>
      %cst_47 = arith.constant 1.000000e+00 : f32
      %180 = vector.broadcast %cst_47 : f32 to vector<8x64xf32>
      %181 = arith.subf %180, %173 : vector<8x64xf32>
      %182 = arith.mulf %181, %179 : vector<8x64xf32>
      %183 = arith.mulf %173, %118 : vector<8x64xf32>
      %184 = arith.addf %182, %183 : vector<8x64xf32>
      %185 = tpu.concatenate %184, %143 in 1 : vector<8x64xf32>, vector<8x64xf32> -> vector<8x128xf32>
      %cst_48 = arith.constant dense<0.000000e+00> : vector<8x256xf32>
      %186 = tpu.matmul %185, %12, %cst_48 {dimension_numbers = #tpu.dot_dimension_numbers<[1], [0], [0], [1], [0, 0, 1, 1], [], []>} : vector<8x128xf32>, vector<128x256xf32>, vector<8x256xf32> -> vector<8x256xf32>
      %187 = arith.addf %186, %14 : vector<8x256xf32>
      %188 = vector.extract_strided_slice %187 {offsets = [0, 0], sizes = [8, 64], strides = [1, 1]} : vector<8x256xf32> to vector<8x64xf32>
      %189 = arith.negf %188 : vector<8x64xf32>
      %190 = math.exp %189 : vector<8x64xf32>
      %cst_49 = arith.constant 1.000000e+00 : f32
      %191 = vector.broadcast %cst_49 : f32 to vector<8x64xf32>
      %192 = arith.addf %191, %190 : vector<8x64xf32>
      %193 = arith.divf %191, %192 : vector<8x64xf32>
      %194 = vector.extract_strided_slice %187 {offsets = [0, 64], sizes = [8, 64], strides = [1, 1]} : vector<8x256xf32> to vector<8x64xf32>
      %195 = arith.negf %194 : vector<8x64xf32>
      %196 = math.exp %195 : vector<8x64xf32>
      %cst_50 = arith.constant 1.000000e+00 : f32
      %197 = vector.broadcast %cst_50 : f32 to vector<8x64xf32>
      %198 = arith.addf %197, %196 : vector<8x64xf32>
      %199 = arith.divf %197, %198 : vector<8x64xf32>
      %200 = vector.extract_strided_slice %187 {offsets = [0, 128], sizes = [8, 64], strides = [1, 1]} : vector<8x256xf32> to vector<8x64xf32>
      %201 = vector.extract_strided_slice %187 {offsets = [0, 192], sizes = [8, 64], strides = [1, 1]} : vector<8x256xf32> to vector<8x64xf32>
      %202 = arith.mulf %193, %201 : vector<8x64xf32>
      %203 = arith.addf %200, %202 : vector<8x64xf32>
      %204 = math.tanh %203 : vector<8x64xf32>
      %cst_51 = arith.constant 1.000000e+00 : f32
      %205 = vector.broadcast %cst_51 : f32 to vector<8x64xf32>
      %206 = arith.subf %205, %199 : vector<8x64xf32>
      %207 = arith.mulf %206, %204 : vector<8x64xf32>
      %208 = arith.mulf %199, %143 : vector<8x64xf32>
      %209 = arith.addf %207, %208 : vector<8x64xf32>
      %210 = vector.broadcast %c2_i32 : i32 to vector<8x1xi32>
      %211 = arith.cmpi slt, %210, %17 : vector<8x1xi32>
      %212 = arith.maximumf %149, %209 : vector<8x64xf32>
      %213 = vector.shape_cast %211 : vector<8x1xi1> to vector<8x1xi1>
      %214 = vector.broadcast %213 : vector<8x1xi1> to vector<8x64xi1>
      %215 = arith.select %214, %212, %149 : vector<8x64xi1>, vector<8x64xf32>
      %216 = arith.addf %153, %209 : vector<8x64xf32>
      %217 = vector.shape_cast %211 : vector<8x1xi1> to vector<8x1xi1>
      %218 = vector.broadcast %217 : vector<8x1xi1> to vector<8x64xi1>
      %219 = arith.select %218, %216, %153 : vector<8x64xi1>, vector<8x64xf32>
      %c3_i32 = arith.constant 3 : i32
      %220 = arith.index_cast %c3_i32 : i32 to index
      %c0_52 = arith.constant 0 : index
      %c0_53 = arith.constant 0 : index
      %221 = vector.load %arg2[%220, %c0_52, %c0_53] : memref<8x8x192xf32, #tpu.memory_space<vmem>>, vector<1x8x192xf32>
      %222 = vector.shape_cast %221 : vector<1x8x192xf32> to vector<8x192xf32>
      %cst_54 = arith.constant dense<0.000000e+00> : vector<8x192xf32>
      %223 = tpu.matmul %184, %11, %cst_54 {dimension_numbers = #tpu.dot_dimension_numbers<[1], [0], [0], [1], [0, 0, 1, 1], [], []>} : vector<8x64xf32>, vector<64x192xf32>, vector<8x192xf32> -> vector<8x192xf32>
      %224 = vector.extract_strided_slice %222 {offsets = [0, 0], sizes = [8, 64], strides = [1, 1]} : vector<8x192xf32> to vector<8x64xf32>
      %225 = vector.extract_strided_slice %223 {offsets = [0, 0], sizes = [8, 64], strides = [1, 1]} : vector<8x192xf32> to vector<8x64xf32>
      %226 = arith.addf %224, %225 : vector<8x64xf32>
      %227 = arith.negf %226 : vector<8x64xf32>
      %228 = math.exp %227 : vector<8x64xf32>
      %cst_55 = arith.constant 1.000000e+00 : f32
      %229 = vector.broadcast %cst_55 : f32 to vector<8x64xf32>
      %230 = arith.addf %229, %228 : vector<8x64xf32>
      %231 = arith.divf %229, %230 : vector<8x64xf32>
      %232 = vector.extract_strided_slice %222 {offsets = [0, 64], sizes = [8, 64], strides = [1, 1]} : vector<8x192xf32> to vector<8x64xf32>
      %233 = vector.extract_strided_slice %223 {offsets = [0, 64], sizes = [8, 64], strides = [1, 1]} : vector<8x192xf32> to vector<8x64xf32>
      %234 = arith.addf %232, %233 : vector<8x64xf32>
      %235 = arith.negf %234 : vector<8x64xf32>
      %236 = math.exp %235 : vector<8x64xf32>
      %cst_56 = arith.constant 1.000000e+00 : f32
      %237 = vector.broadcast %cst_56 : f32 to vector<8x64xf32>
      %238 = arith.addf %237, %236 : vector<8x64xf32>
      %239 = arith.divf %237, %238 : vector<8x64xf32>
      %240 = vector.extract_strided_slice %222 {offsets = [0, 128], sizes = [8, 64], strides = [1, 1]} : vector<8x192xf32> to vector<8x64xf32>
      %241 = vector.extract_strided_slice %223 {offsets = [0, 128], sizes = [8, 64], strides = [1, 1]} : vector<8x192xf32> to vector<8x64xf32>
      %242 = arith.addf %241, %13 : vector<8x64xf32>
      %243 = arith.mulf %231, %242 : vector<8x64xf32>
      %244 = arith.addf %240, %243 : vector<8x64xf32>
      %245 = math.tanh %244 : vector<8x64xf32>
      %cst_57 = arith.constant 1.000000e+00 : f32
      %246 = vector.broadcast %cst_57 : f32 to vector<8x64xf32>
      %247 = arith.subf %246, %239 : vector<8x64xf32>
      %248 = arith.mulf %247, %245 : vector<8x64xf32>
      %249 = arith.mulf %239, %184 : vector<8x64xf32>
      %250 = arith.addf %248, %249 : vector<8x64xf32>
      %251 = tpu.concatenate %250, %209 in 1 : vector<8x64xf32>, vector<8x64xf32> -> vector<8x128xf32>
      %cst_58 = arith.constant dense<0.000000e+00> : vector<8x256xf32>
      %252 = tpu.matmul %251, %12, %cst_58 {dimension_numbers = #tpu.dot_dimension_numbers<[1], [0], [0], [1], [0, 0, 1, 1], [], []>} : vector<8x128xf32>, vector<128x256xf32>, vector<8x256xf32> -> vector<8x256xf32>
      %253 = arith.addf %252, %14 : vector<8x256xf32>
      %254 = vector.extract_strided_slice %253 {offsets = [0, 0], sizes = [8, 64], strides = [1, 1]} : vector<8x256xf32> to vector<8x64xf32>
      %255 = arith.negf %254 : vector<8x64xf32>
      %256 = math.exp %255 : vector<8x64xf32>
      %cst_59 = arith.constant 1.000000e+00 : f32
      %257 = vector.broadcast %cst_59 : f32 to vector<8x64xf32>
      %258 = arith.addf %257, %256 : vector<8x64xf32>
      %259 = arith.divf %257, %258 : vector<8x64xf32>
      %260 = vector.extract_strided_slice %253 {offsets = [0, 64], sizes = [8, 64], strides = [1, 1]} : vector<8x256xf32> to vector<8x64xf32>
      %261 = arith.negf %260 : vector<8x64xf32>
      %262 = math.exp %261 : vector<8x64xf32>
      %cst_60 = arith.constant 1.000000e+00 : f32
      %263 = vector.broadcast %cst_60 : f32 to vector<8x64xf32>
      %264 = arith.addf %263, %262 : vector<8x64xf32>
      %265 = arith.divf %263, %264 : vector<8x64xf32>
      %266 = vector.extract_strided_slice %253 {offsets = [0, 128], sizes = [8, 64], strides = [1, 1]} : vector<8x256xf32> to vector<8x64xf32>
      %267 = vector.extract_strided_slice %253 {offsets = [0, 192], sizes = [8, 64], strides = [1, 1]} : vector<8x256xf32> to vector<8x64xf32>
      %268 = arith.mulf %259, %267 : vector<8x64xf32>
      %269 = arith.addf %266, %268 : vector<8x64xf32>
      %270 = math.tanh %269 : vector<8x64xf32>
      %cst_61 = arith.constant 1.000000e+00 : f32
      %271 = vector.broadcast %cst_61 : f32 to vector<8x64xf32>
      %272 = arith.subf %271, %265 : vector<8x64xf32>
      %273 = arith.mulf %272, %270 : vector<8x64xf32>
      %274 = arith.mulf %265, %209 : vector<8x64xf32>
      %275 = arith.addf %273, %274 : vector<8x64xf32>
      %276 = vector.broadcast %c3_i32 : i32 to vector<8x1xi32>
      %277 = arith.cmpi slt, %276, %17 : vector<8x1xi32>
      %278 = arith.maximumf %215, %275 : vector<8x64xf32>
      %279 = vector.shape_cast %277 : vector<8x1xi1> to vector<8x1xi1>
      %280 = vector.broadcast %279 : vector<8x1xi1> to vector<8x64xi1>
      %281 = arith.select %280, %278, %215 : vector<8x64xi1>, vector<8x64xf32>
      %282 = arith.addf %219, %275 : vector<8x64xf32>
      %283 = vector.shape_cast %277 : vector<8x1xi1> to vector<8x1xi1>
      %284 = vector.broadcast %283 : vector<8x1xi1> to vector<8x64xi1>
      %285 = arith.select %284, %282, %219 : vector<8x64xi1>, vector<8x64xf32>
      %c4_i32 = arith.constant 4 : i32
      %286 = arith.index_cast %c4_i32 : i32 to index
      %c0_62 = arith.constant 0 : index
      %c0_63 = arith.constant 0 : index
      %287 = vector.load %arg2[%286, %c0_62, %c0_63] : memref<8x8x192xf32, #tpu.memory_space<vmem>>, vector<1x8x192xf32>
      %288 = vector.shape_cast %287 : vector<1x8x192xf32> to vector<8x192xf32>
      %cst_64 = arith.constant dense<0.000000e+00> : vector<8x192xf32>
      %289 = tpu.matmul %250, %11, %cst_64 {dimension_numbers = #tpu.dot_dimension_numbers<[1], [0], [0], [1], [0, 0, 1, 1], [], []>} : vector<8x64xf32>, vector<64x192xf32>, vector<8x192xf32> -> vector<8x192xf32>
      %290 = vector.extract_strided_slice %288 {offsets = [0, 0], sizes = [8, 64], strides = [1, 1]} : vector<8x192xf32> to vector<8x64xf32>
      %291 = vector.extract_strided_slice %289 {offsets = [0, 0], sizes = [8, 64], strides = [1, 1]} : vector<8x192xf32> to vector<8x64xf32>
      %292 = arith.addf %290, %291 : vector<8x64xf32>
      %293 = arith.negf %292 : vector<8x64xf32>
      %294 = math.exp %293 : vector<8x64xf32>
      %cst_65 = arith.constant 1.000000e+00 : f32
      %295 = vector.broadcast %cst_65 : f32 to vector<8x64xf32>
      %296 = arith.addf %295, %294 : vector<8x64xf32>
      %297 = arith.divf %295, %296 : vector<8x64xf32>
      %298 = vector.extract_strided_slice %288 {offsets = [0, 64], sizes = [8, 64], strides = [1, 1]} : vector<8x192xf32> to vector<8x64xf32>
      %299 = vector.extract_strided_slice %289 {offsets = [0, 64], sizes = [8, 64], strides = [1, 1]} : vector<8x192xf32> to vector<8x64xf32>
      %300 = arith.addf %298, %299 : vector<8x64xf32>
      %301 = arith.negf %300 : vector<8x64xf32>
      %302 = math.exp %301 : vector<8x64xf32>
      %cst_66 = arith.constant 1.000000e+00 : f32
      %303 = vector.broadcast %cst_66 : f32 to vector<8x64xf32>
      %304 = arith.addf %303, %302 : vector<8x64xf32>
      %305 = arith.divf %303, %304 : vector<8x64xf32>
      %306 = vector.extract_strided_slice %288 {offsets = [0, 128], sizes = [8, 64], strides = [1, 1]} : vector<8x192xf32> to vector<8x64xf32>
      %307 = vector.extract_strided_slice %289 {offsets = [0, 128], sizes = [8, 64], strides = [1, 1]} : vector<8x192xf32> to vector<8x64xf32>
      %308 = arith.addf %307, %13 : vector<8x64xf32>
      %309 = arith.mulf %297, %308 : vector<8x64xf32>
      %310 = arith.addf %306, %309 : vector<8x64xf32>
      %311 = math.tanh %310 : vector<8x64xf32>
      %cst_67 = arith.constant 1.000000e+00 : f32
      %312 = vector.broadcast %cst_67 : f32 to vector<8x64xf32>
      %313 = arith.subf %312, %305 : vector<8x64xf32>
      %314 = arith.mulf %313, %311 : vector<8x64xf32>
      %315 = arith.mulf %305, %250 : vector<8x64xf32>
      %316 = arith.addf %314, %315 : vector<8x64xf32>
      %317 = tpu.concatenate %316, %275 in 1 : vector<8x64xf32>, vector<8x64xf32> -> vector<8x128xf32>
      %cst_68 = arith.constant dense<0.000000e+00> : vector<8x256xf32>
      %318 = tpu.matmul %317, %12, %cst_68 {dimension_numbers = #tpu.dot_dimension_numbers<[1], [0], [0], [1], [0, 0, 1, 1], [], []>} : vector<8x128xf32>, vector<128x256xf32>, vector<8x256xf32> -> vector<8x256xf32>
      %319 = arith.addf %318, %14 : vector<8x256xf32>
      %320 = vector.extract_strided_slice %319 {offsets = [0, 0], sizes = [8, 64], strides = [1, 1]} : vector<8x256xf32> to vector<8x64xf32>
      %321 = arith.negf %320 : vector<8x64xf32>
      %322 = math.exp %321 : vector<8x64xf32>
      %cst_69 = arith.constant 1.000000e+00 : f32
      %323 = vector.broadcast %cst_69 : f32 to vector<8x64xf32>
      %324 = arith.addf %323, %322 : vector<8x64xf32>
      %325 = arith.divf %323, %324 : vector<8x64xf32>
      %326 = vector.extract_strided_slice %319 {offsets = [0, 64], sizes = [8, 64], strides = [1, 1]} : vector<8x256xf32> to vector<8x64xf32>
      %327 = arith.negf %326 : vector<8x64xf32>
      %328 = math.exp %327 : vector<8x64xf32>
      %cst_70 = arith.constant 1.000000e+00 : f32
      %329 = vector.broadcast %cst_70 : f32 to vector<8x64xf32>
      %330 = arith.addf %329, %328 : vector<8x64xf32>
      %331 = arith.divf %329, %330 : vector<8x64xf32>
      %332 = vector.extract_strided_slice %319 {offsets = [0, 128], sizes = [8, 64], strides = [1, 1]} : vector<8x256xf32> to vector<8x64xf32>
      %333 = vector.extract_strided_slice %319 {offsets = [0, 192], sizes = [8, 64], strides = [1, 1]} : vector<8x256xf32> to vector<8x64xf32>
      %334 = arith.mulf %325, %333 : vector<8x64xf32>
      %335 = arith.addf %332, %334 : vector<8x64xf32>
      %336 = math.tanh %335 : vector<8x64xf32>
      %cst_71 = arith.constant 1.000000e+00 : f32
      %337 = vector.broadcast %cst_71 : f32 to vector<8x64xf32>
      %338 = arith.subf %337, %331 : vector<8x64xf32>
      %339 = arith.mulf %338, %336 : vector<8x64xf32>
      %340 = arith.mulf %331, %275 : vector<8x64xf32>
      %341 = arith.addf %339, %340 : vector<8x64xf32>
      %342 = vector.broadcast %c4_i32 : i32 to vector<8x1xi32>
      %343 = arith.cmpi slt, %342, %17 : vector<8x1xi32>
      %344 = arith.maximumf %281, %341 : vector<8x64xf32>
      %345 = vector.shape_cast %343 : vector<8x1xi1> to vector<8x1xi1>
      %346 = vector.broadcast %345 : vector<8x1xi1> to vector<8x64xi1>
      %347 = arith.select %346, %344, %281 : vector<8x64xi1>, vector<8x64xf32>
      %348 = arith.addf %285, %341 : vector<8x64xf32>
      %349 = vector.shape_cast %343 : vector<8x1xi1> to vector<8x1xi1>
      %350 = vector.broadcast %349 : vector<8x1xi1> to vector<8x64xi1>
      %351 = arith.select %350, %348, %285 : vector<8x64xi1>, vector<8x64xf32>
      %c5_i32 = arith.constant 5 : i32
      %352 = arith.index_cast %c5_i32 : i32 to index
      %c0_72 = arith.constant 0 : index
      %c0_73 = arith.constant 0 : index
      %353 = vector.load %arg2[%352, %c0_72, %c0_73] : memref<8x8x192xf32, #tpu.memory_space<vmem>>, vector<1x8x192xf32>
      %354 = vector.shape_cast %353 : vector<1x8x192xf32> to vector<8x192xf32>
      %cst_74 = arith.constant dense<0.000000e+00> : vector<8x192xf32>
      %355 = tpu.matmul %316, %11, %cst_74 {dimension_numbers = #tpu.dot_dimension_numbers<[1], [0], [0], [1], [0, 0, 1, 1], [], []>} : vector<8x64xf32>, vector<64x192xf32>, vector<8x192xf32> -> vector<8x192xf32>
      %356 = vector.extract_strided_slice %354 {offsets = [0, 0], sizes = [8, 64], strides = [1, 1]} : vector<8x192xf32> to vector<8x64xf32>
      %357 = vector.extract_strided_slice %355 {offsets = [0, 0], sizes = [8, 64], strides = [1, 1]} : vector<8x192xf32> to vector<8x64xf32>
      %358 = arith.addf %356, %357 : vector<8x64xf32>
      %359 = arith.negf %358 : vector<8x64xf32>
      %360 = math.exp %359 : vector<8x64xf32>
      %cst_75 = arith.constant 1.000000e+00 : f32
      %361 = vector.broadcast %cst_75 : f32 to vector<8x64xf32>
      %362 = arith.addf %361, %360 : vector<8x64xf32>
      %363 = arith.divf %361, %362 : vector<8x64xf32>
      %364 = vector.extract_strided_slice %354 {offsets = [0, 64], sizes = [8, 64], strides = [1, 1]} : vector<8x192xf32> to vector<8x64xf32>
      %365 = vector.extract_strided_slice %355 {offsets = [0, 64], sizes = [8, 64], strides = [1, 1]} : vector<8x192xf32> to vector<8x64xf32>
      %366 = arith.addf %364, %365 : vector<8x64xf32>
      %367 = arith.negf %366 : vector<8x64xf32>
      %368 = math.exp %367 : vector<8x64xf32>
      %cst_76 = arith.constant 1.000000e+00 : f32
      %369 = vector.broadcast %cst_76 : f32 to vector<8x64xf32>
      %370 = arith.addf %369, %368 : vector<8x64xf32>
      %371 = arith.divf %369, %370 : vector<8x64xf32>
      %372 = vector.extract_strided_slice %354 {offsets = [0, 128], sizes = [8, 64], strides = [1, 1]} : vector<8x192xf32> to vector<8x64xf32>
      %373 = vector.extract_strided_slice %355 {offsets = [0, 128], sizes = [8, 64], strides = [1, 1]} : vector<8x192xf32> to vector<8x64xf32>
      %374 = arith.addf %373, %13 : vector<8x64xf32>
      %375 = arith.mulf %363, %374 : vector<8x64xf32>
      %376 = arith.addf %372, %375 : vector<8x64xf32>
      %377 = math.tanh %376 : vector<8x64xf32>
      %cst_77 = arith.constant 1.000000e+00 : f32
      %378 = vector.broadcast %cst_77 : f32 to vector<8x64xf32>
      %379 = arith.subf %378, %371 : vector<8x64xf32>
      %380 = arith.mulf %379, %377 : vector<8x64xf32>
      %381 = arith.mulf %371, %316 : vector<8x64xf32>
      %382 = arith.addf %380, %381 : vector<8x64xf32>
      %383 = tpu.concatenate %382, %341 in 1 : vector<8x64xf32>, vector<8x64xf32> -> vector<8x128xf32>
      %cst_78 = arith.constant dense<0.000000e+00> : vector<8x256xf32>
      %384 = tpu.matmul %383, %12, %cst_78 {dimension_numbers = #tpu.dot_dimension_numbers<[1], [0], [0], [1], [0, 0, 1, 1], [], []>} : vector<8x128xf32>, vector<128x256xf32>, vector<8x256xf32> -> vector<8x256xf32>
      %385 = arith.addf %384, %14 : vector<8x256xf32>
      %386 = vector.extract_strided_slice %385 {offsets = [0, 0], sizes = [8, 64], strides = [1, 1]} : vector<8x256xf32> to vector<8x64xf32>
      %387 = arith.negf %386 : vector<8x64xf32>
      %388 = math.exp %387 : vector<8x64xf32>
      %cst_79 = arith.constant 1.000000e+00 : f32
      %389 = vector.broadcast %cst_79 : f32 to vector<8x64xf32>
      %390 = arith.addf %389, %388 : vector<8x64xf32>
      %391 = arith.divf %389, %390 : vector<8x64xf32>
      %392 = vector.extract_strided_slice %385 {offsets = [0, 64], sizes = [8, 64], strides = [1, 1]} : vector<8x256xf32> to vector<8x64xf32>
      %393 = arith.negf %392 : vector<8x64xf32>
      %394 = math.exp %393 : vector<8x64xf32>
      %cst_80 = arith.constant 1.000000e+00 : f32
      %395 = vector.broadcast %cst_80 : f32 to vector<8x64xf32>
      %396 = arith.addf %395, %394 : vector<8x64xf32>
      %397 = arith.divf %395, %396 : vector<8x64xf32>
      %398 = vector.extract_strided_slice %385 {offsets = [0, 128], sizes = [8, 64], strides = [1, 1]} : vector<8x256xf32> to vector<8x64xf32>
      %399 = vector.extract_strided_slice %385 {offsets = [0, 192], sizes = [8, 64], strides = [1, 1]} : vector<8x256xf32> to vector<8x64xf32>
      %400 = arith.mulf %391, %399 : vector<8x64xf32>
      %401 = arith.addf %398, %400 : vector<8x64xf32>
      %402 = math.tanh %401 : vector<8x64xf32>
      %cst_81 = arith.constant 1.000000e+00 : f32
      %403 = vector.broadcast %cst_81 : f32 to vector<8x64xf32>
      %404 = arith.subf %403, %397 : vector<8x64xf32>
      %405 = arith.mulf %404, %402 : vector<8x64xf32>
      %406 = arith.mulf %397, %341 : vector<8x64xf32>
      %407 = arith.addf %405, %406 : vector<8x64xf32>
      %408 = vector.broadcast %c5_i32 : i32 to vector<8x1xi32>
      %409 = arith.cmpi slt, %408, %17 : vector<8x1xi32>
      %410 = arith.maximumf %347, %407 : vector<8x64xf32>
      %411 = vector.shape_cast %409 : vector<8x1xi1> to vector<8x1xi1>
      %412 = vector.broadcast %411 : vector<8x1xi1> to vector<8x64xi1>
      %413 = arith.select %412, %410, %347 : vector<8x64xi1>, vector<8x64xf32>
      %414 = arith.addf %351, %407 : vector<8x64xf32>
      %415 = vector.shape_cast %409 : vector<8x1xi1> to vector<8x1xi1>
      %416 = vector.broadcast %415 : vector<8x1xi1> to vector<8x64xi1>
      %417 = arith.select %416, %414, %351 : vector<8x64xi1>, vector<8x64xf32>
      %c6_i32 = arith.constant 6 : i32
      %418 = arith.index_cast %c6_i32 : i32 to index
      %c0_82 = arith.constant 0 : index
      %c0_83 = arith.constant 0 : index
      %419 = vector.load %arg2[%418, %c0_82, %c0_83] : memref<8x8x192xf32, #tpu.memory_space<vmem>>, vector<1x8x192xf32>
      %420 = vector.shape_cast %419 : vector<1x8x192xf32> to vector<8x192xf32>
      %cst_84 = arith.constant dense<0.000000e+00> : vector<8x192xf32>
      %421 = tpu.matmul %382, %11, %cst_84 {dimension_numbers = #tpu.dot_dimension_numbers<[1], [0], [0], [1], [0, 0, 1, 1], [], []>} : vector<8x64xf32>, vector<64x192xf32>, vector<8x192xf32> -> vector<8x192xf32>
      %422 = vector.extract_strided_slice %420 {offsets = [0, 0], sizes = [8, 64], strides = [1, 1]} : vector<8x192xf32> to vector<8x64xf32>
      %423 = vector.extract_strided_slice %421 {offsets = [0, 0], sizes = [8, 64], strides = [1, 1]} : vector<8x192xf32> to vector<8x64xf32>
      %424 = arith.addf %422, %423 : vector<8x64xf32>
      %425 = arith.negf %424 : vector<8x64xf32>
      %426 = math.exp %425 : vector<8x64xf32>
      %cst_85 = arith.constant 1.000000e+00 : f32
      %427 = vector.broadcast %cst_85 : f32 to vector<8x64xf32>
      %428 = arith.addf %427, %426 : vector<8x64xf32>
      %429 = arith.divf %427, %428 : vector<8x64xf32>
      %430 = vector.extract_strided_slice %420 {offsets = [0, 64], sizes = [8, 64], strides = [1, 1]} : vector<8x192xf32> to vector<8x64xf32>
      %431 = vector.extract_strided_slice %421 {offsets = [0, 64], sizes = [8, 64], strides = [1, 1]} : vector<8x192xf32> to vector<8x64xf32>
      %432 = arith.addf %430, %431 : vector<8x64xf32>
      %433 = arith.negf %432 : vector<8x64xf32>
      %434 = math.exp %433 : vector<8x64xf32>
      %cst_86 = arith.constant 1.000000e+00 : f32
      %435 = vector.broadcast %cst_86 : f32 to vector<8x64xf32>
      %436 = arith.addf %435, %434 : vector<8x64xf32>
      %437 = arith.divf %435, %436 : vector<8x64xf32>
      %438 = vector.extract_strided_slice %420 {offsets = [0, 128], sizes = [8, 64], strides = [1, 1]} : vector<8x192xf32> to vector<8x64xf32>
      %439 = vector.extract_strided_slice %421 {offsets = [0, 128], sizes = [8, 64], strides = [1, 1]} : vector<8x192xf32> to vector<8x64xf32>
      %440 = arith.addf %439, %13 : vector<8x64xf32>
      %441 = arith.mulf %429, %440 : vector<8x64xf32>
      %442 = arith.addf %438, %441 : vector<8x64xf32>
      %443 = math.tanh %442 : vector<8x64xf32>
      %cst_87 = arith.constant 1.000000e+00 : f32
      %444 = vector.broadcast %cst_87 : f32 to vector<8x64xf32>
      %445 = arith.subf %444, %437 : vector<8x64xf32>
      %446 = arith.mulf %445, %443 : vector<8x64xf32>
      %447 = arith.mulf %437, %382 : vector<8x64xf32>
      %448 = arith.addf %446, %447 : vector<8x64xf32>
      %449 = tpu.concatenate %448, %407 in 1 : vector<8x64xf32>, vector<8x64xf32> -> vector<8x128xf32>
      %cst_88 = arith.constant dense<0.000000e+00> : vector<8x256xf32>
      %450 = tpu.matmul %449, %12, %cst_88 {dimension_numbers = #tpu.dot_dimension_numbers<[1], [0], [0], [1], [0, 0, 1, 1], [], []>} : vector<8x128xf32>, vector<128x256xf32>, vector<8x256xf32> -> vector<8x256xf32>
      %451 = arith.addf %450, %14 : vector<8x256xf32>
      %452 = vector.extract_strided_slice %451 {offsets = [0, 0], sizes = [8, 64], strides = [1, 1]} : vector<8x256xf32> to vector<8x64xf32>
      %453 = arith.negf %452 : vector<8x64xf32>
      %454 = math.exp %453 : vector<8x64xf32>
      %cst_89 = arith.constant 1.000000e+00 : f32
      %455 = vector.broadcast %cst_89 : f32 to vector<8x64xf32>
      %456 = arith.addf %455, %454 : vector<8x64xf32>
      %457 = arith.divf %455, %456 : vector<8x64xf32>
      %458 = vector.extract_strided_slice %451 {offsets = [0, 64], sizes = [8, 64], strides = [1, 1]} : vector<8x256xf32> to vector<8x64xf32>
      %459 = arith.negf %458 : vector<8x64xf32>
      %460 = math.exp %459 : vector<8x64xf32>
      %cst_90 = arith.constant 1.000000e+00 : f32
      %461 = vector.broadcast %cst_90 : f32 to vector<8x64xf32>
      %462 = arith.addf %461, %460 : vector<8x64xf32>
      %463 = arith.divf %461, %462 : vector<8x64xf32>
      %464 = vector.extract_strided_slice %451 {offsets = [0, 128], sizes = [8, 64], strides = [1, 1]} : vector<8x256xf32> to vector<8x64xf32>
      %465 = vector.extract_strided_slice %451 {offsets = [0, 192], sizes = [8, 64], strides = [1, 1]} : vector<8x256xf32> to vector<8x64xf32>
      %466 = arith.mulf %457, %465 : vector<8x64xf32>
      %467 = arith.addf %464, %466 : vector<8x64xf32>
      %468 = math.tanh %467 : vector<8x64xf32>
      %cst_91 = arith.constant 1.000000e+00 : f32
      %469 = vector.broadcast %cst_91 : f32 to vector<8x64xf32>
      %470 = arith.subf %469, %463 : vector<8x64xf32>
      %471 = arith.mulf %470, %468 : vector<8x64xf32>
      %472 = arith.mulf %463, %407 : vector<8x64xf32>
      %473 = arith.addf %471, %472 : vector<8x64xf32>
      %474 = vector.broadcast %c6_i32 : i32 to vector<8x1xi32>
      %475 = arith.cmpi slt, %474, %17 : vector<8x1xi32>
      %476 = arith.maximumf %413, %473 : vector<8x64xf32>
      %477 = vector.shape_cast %475 : vector<8x1xi1> to vector<8x1xi1>
      %478 = vector.broadcast %477 : vector<8x1xi1> to vector<8x64xi1>
      %479 = arith.select %478, %476, %413 : vector<8x64xi1>, vector<8x64xf32>
      %480 = arith.addf %417, %473 : vector<8x64xf32>
      %481 = vector.shape_cast %475 : vector<8x1xi1> to vector<8x1xi1>
      %482 = vector.broadcast %481 : vector<8x1xi1> to vector<8x64xi1>
      %483 = arith.select %482, %480, %417 : vector<8x64xi1>, vector<8x64xf32>
      %c7_i32 = arith.constant 7 : i32
      %484 = arith.index_cast %c7_i32 : i32 to index
      %c0_92 = arith.constant 0 : index
      %c0_93 = arith.constant 0 : index
      %485 = vector.load %arg2[%484, %c0_92, %c0_93] : memref<8x8x192xf32, #tpu.memory_space<vmem>>, vector<1x8x192xf32>
      %486 = vector.shape_cast %485 : vector<1x8x192xf32> to vector<8x192xf32>
      %cst_94 = arith.constant dense<0.000000e+00> : vector<8x192xf32>
      %487 = tpu.matmul %448, %11, %cst_94 {dimension_numbers = #tpu.dot_dimension_numbers<[1], [0], [0], [1], [0, 0, 1, 1], [], []>} : vector<8x64xf32>, vector<64x192xf32>, vector<8x192xf32> -> vector<8x192xf32>
      %488 = vector.extract_strided_slice %486 {offsets = [0, 0], sizes = [8, 64], strides = [1, 1]} : vector<8x192xf32> to vector<8x64xf32>
      %489 = vector.extract_strided_slice %487 {offsets = [0, 0], sizes = [8, 64], strides = [1, 1]} : vector<8x192xf32> to vector<8x64xf32>
      %490 = arith.addf %488, %489 : vector<8x64xf32>
      %491 = arith.negf %490 : vector<8x64xf32>
      %492 = math.exp %491 : vector<8x64xf32>
      %cst_95 = arith.constant 1.000000e+00 : f32
      %493 = vector.broadcast %cst_95 : f32 to vector<8x64xf32>
      %494 = arith.addf %493, %492 : vector<8x64xf32>
      %495 = arith.divf %493, %494 : vector<8x64xf32>
      %496 = vector.extract_strided_slice %486 {offsets = [0, 64], sizes = [8, 64], strides = [1, 1]} : vector<8x192xf32> to vector<8x64xf32>
      %497 = vector.extract_strided_slice %487 {offsets = [0, 64], sizes = [8, 64], strides = [1, 1]} : vector<8x192xf32> to vector<8x64xf32>
      %498 = arith.addf %496, %497 : vector<8x64xf32>
      %499 = arith.negf %498 : vector<8x64xf32>
      %500 = math.exp %499 : vector<8x64xf32>
      %cst_96 = arith.constant 1.000000e+00 : f32
      %501 = vector.broadcast %cst_96 : f32 to vector<8x64xf32>
      %502 = arith.addf %501, %500 : vector<8x64xf32>
      %503 = arith.divf %501, %502 : vector<8x64xf32>
      %504 = vector.extract_strided_slice %486 {offsets = [0, 128], sizes = [8, 64], strides = [1, 1]} : vector<8x192xf32> to vector<8x64xf32>
      %505 = vector.extract_strided_slice %487 {offsets = [0, 128], sizes = [8, 64], strides = [1, 1]} : vector<8x192xf32> to vector<8x64xf32>
      %506 = arith.addf %505, %13 : vector<8x64xf32>
      %507 = arith.mulf %495, %506 : vector<8x64xf32>
      %508 = arith.addf %504, %507 : vector<8x64xf32>
      %509 = math.tanh %508 : vector<8x64xf32>
      %cst_97 = arith.constant 1.000000e+00 : f32
      %510 = vector.broadcast %cst_97 : f32 to vector<8x64xf32>
      %511 = arith.subf %510, %503 : vector<8x64xf32>
      %512 = arith.mulf %511, %509 : vector<8x64xf32>
      %513 = arith.mulf %503, %448 : vector<8x64xf32>
      %514 = arith.addf %512, %513 : vector<8x64xf32>
      %515 = tpu.concatenate %514, %473 in 1 : vector<8x64xf32>, vector<8x64xf32> -> vector<8x128xf32>
      %cst_98 = arith.constant dense<0.000000e+00> : vector<8x256xf32>
      %516 = tpu.matmul %515, %12, %cst_98 {dimension_numbers = #tpu.dot_dimension_numbers<[1], [0], [0], [1], [0, 0, 1, 1], [], []>} : vector<8x128xf32>, vector<128x256xf32>, vector<8x256xf32> -> vector<8x256xf32>
      %517 = arith.addf %516, %14 : vector<8x256xf32>
      %518 = vector.extract_strided_slice %517 {offsets = [0, 0], sizes = [8, 64], strides = [1, 1]} : vector<8x256xf32> to vector<8x64xf32>
      %519 = arith.negf %518 : vector<8x64xf32>
      %520 = math.exp %519 : vector<8x64xf32>
      %cst_99 = arith.constant 1.000000e+00 : f32
      %521 = vector.broadcast %cst_99 : f32 to vector<8x64xf32>
      %522 = arith.addf %521, %520 : vector<8x64xf32>
      %523 = arith.divf %521, %522 : vector<8x64xf32>
      %524 = vector.extract_strided_slice %517 {offsets = [0, 64], sizes = [8, 64], strides = [1, 1]} : vector<8x256xf32> to vector<8x64xf32>
      %525 = arith.negf %524 : vector<8x64xf32>
      %526 = math.exp %525 : vector<8x64xf32>
      %cst_100 = arith.constant 1.000000e+00 : f32
      %527 = vector.broadcast %cst_100 : f32 to vector<8x64xf32>
      %528 = arith.addf %527, %526 : vector<8x64xf32>
      %529 = arith.divf %527, %528 : vector<8x64xf32>
      %530 = vector.extract_strided_slice %517 {offsets = [0, 128], sizes = [8, 64], strides = [1, 1]} : vector<8x256xf32> to vector<8x64xf32>
      %531 = vector.extract_strided_slice %517 {offsets = [0, 192], sizes = [8, 64], strides = [1, 1]} : vector<8x256xf32> to vector<8x64xf32>
      %532 = arith.mulf %523, %531 : vector<8x64xf32>
      %533 = arith.addf %530, %532 : vector<8x64xf32>
      %534 = math.tanh %533 : vector<8x64xf32>
      %cst_101 = arith.constant 1.000000e+00 : f32
      %535 = vector.broadcast %cst_101 : f32 to vector<8x64xf32>
      %536 = arith.subf %535, %529 : vector<8x64xf32>
      %537 = arith.mulf %536, %534 : vector<8x64xf32>
      %538 = arith.mulf %529, %473 : vector<8x64xf32>
      %539 = arith.addf %537, %538 : vector<8x64xf32>
      %540 = vector.broadcast %c7_i32 : i32 to vector<8x1xi32>
      %541 = arith.cmpi slt, %540, %17 : vector<8x1xi32>
      %542 = arith.maximumf %479, %539 : vector<8x64xf32>
      %543 = vector.shape_cast %541 : vector<8x1xi1> to vector<8x1xi1>
      %544 = vector.broadcast %543 : vector<8x1xi1> to vector<8x64xi1>
      %545 = arith.select %544, %542, %479 : vector<8x64xi1>, vector<8x64xf32>
      %546 = arith.addf %483, %539 : vector<8x64xf32>
      %547 = vector.shape_cast %541 : vector<8x1xi1> to vector<8x1xi1>
      %548 = vector.broadcast %547 : vector<8x1xi1> to vector<8x64xi1>
      %549 = arith.select %548, %546, %483 : vector<8x64xi1>, vector<8x64xf32>
      %c8_i32_102 = arith.constant 8 : i32
      %c0_103 = arith.constant 0 : index
      %c0_104 = arith.constant 0 : index
      %550 = vector.load %arg12[%c0_103, %c0_104] : memref<8x64xf32, #tpu.memory_space<vmem>>, vector<8x64xf32>
      tpu.vector_store %arg12[%c0_103, %c0_104], %514 {strides = array<i32>} : memref<8x64xf32, #tpu.memory_space<vmem>>, vector<8x64xf32>,
      %c0_105 = arith.constant 0 : index
      %c0_106 = arith.constant 0 : index
      %551 = vector.load %arg13[%c0_105, %c0_106] : memref<8x64xf32, #tpu.memory_space<vmem>>, vector<8x64xf32>
      tpu.vector_store %arg13[%c0_105, %c0_106], %539 {strides = array<i32>} : memref<8x64xf32, #tpu.memory_space<vmem>>, vector<8x64xf32>,
      %c0_107 = arith.constant 0 : index
      %c0_108 = arith.constant 0 : index
      %552 = vector.load %arg14[%c0_107, %c0_108] : memref<8x64xf32, #tpu.memory_space<vmem>>, vector<8x64xf32>
      tpu.vector_store %arg14[%c0_107, %c0_108], %545 {strides = array<i32>} : memref<8x64xf32, #tpu.memory_space<vmem>>, vector<8x64xf32>,
      %c0_109 = arith.constant 0 : index
      %c0_110 = arith.constant 0 : index
      %553 = vector.load %arg15[%c0_109, %c0_110] : memref<8x64xf32, #tpu.memory_space<vmem>>, vector<8x64xf32>
      tpu.vector_store %arg15[%c0_109, %c0_110], %549 {strides = array<i32>} : memref<8x64xf32, #tpu.memory_space<vmem>>, vector<8x64xf32>,
    } else {
    }
    %c0_i32_2 = arith.constant 0 : i32
    %8 = arith.cmpi eq, %arg0, %c0_i32_2 : i32
    %9 = arith.extui %8 : i1 to i32
    %c0_i32_3 = arith.constant 0 : i32
    %10 = arith.cmpi ne, %9, %c0_i32_3 : i32
    scf.if %10 {
      %c0_4 = arith.constant 0 : index
      %c0_5 = arith.constant 0 : index
      %11 = vector.load %arg15[%c0_4, %c0_5] : memref<8x64xf32, #tpu.memory_space<vmem>>, vector<8x64xf32>
      %c0_6 = arith.constant 0 : index
      %c0_7 = arith.constant 0 : index
      %12 = vector.load %arg8[%c0_6, %c0_7] : memref<8x1xf32, #tpu.memory_space<vmem>>, vector<8x1xf32>
      %13 = vector.broadcast %12 : vector<8x1xf32> to vector<8x64xf32>
      %14 = arith.mulf %11, %13 : vector<8x64xf32>
      %c0_8 = arith.constant 0 : index
      %c0_9 = arith.constant 0 : index
      %15 = vector.load %arg14[%c0_8, %c0_9] : memref<8x64xf32, #tpu.memory_space<vmem>>, vector<8x64xf32>
      %16 = tpu.concatenate %15, %14 in 1 : vector<8x64xf32>, vector<8x64xf32> -> vector<8x128xf32>
      %c0_10 = arith.constant 0 : index
      %c0_11 = arith.constant 0 : index
      %17 = vector.load %arg9[%c0_10, %c0_11] : memref<128x3xf32, #tpu.memory_space<vmem>>, vector<128x3xf32>
      %cst = arith.constant dense<0.000000e+00> : vector<8x3xf32>
      %18 = tpu.matmul %16, %17, %cst {dimension_numbers = #tpu.dot_dimension_numbers<[1], [0], [0], [1], [0, 0, 1, 1], [], []>} : vector<8x128xf32>, vector<128x3xf32>, vector<8x3xf32> -> vector<8x3xf32>
      %c0_12 = arith.constant 0 : index
      %c0_13 = arith.constant 0 : index
      %19 = vector.load %arg10[%c0_12, %c0_13] : memref<1x3xf32, #tpu.memory_space<vmem>>, vector<1x3xf32>
      %20 = vector.broadcast %19 : vector<1x3xf32> to vector<8x3xf32>
      %21 = arith.addf %18, %20 : vector<8x3xf32>
      %c0_14 = arith.constant 0 : index
      %c0_15 = arith.constant 0 : index
      %22 = vector.load %arg11[%c0_14, %c0_15] : memref<8x3xf32, #tpu.memory_space<vmem>>, vector<8x3xf32>
      tpu.vector_store %arg11[%c0_14, %c0_15], %21 {strides = array<i32>} : memref<8x3xf32, #tpu.memory_space<vmem>>, vector<8x3xf32>,
    } else {
    }
    return
  }
  func.func @transform_0(%arg0: i32, %arg1: memref<1xi32, #tpu.memory_space<smem>>) -> (i32, i32, i32) {
    %c0_i32 = arith.constant 0 : i32
    %c0_i32_0 = arith.constant 0 : i32
    %c0_i32_1 = arith.constant 0 : i32
    return %arg0, %c0_i32, %c0_i32_0 : i32, i32, i32
  }
  func.func @transform_1(%arg0: i32, %arg1: memref<1xi32, #tpu.memory_space<smem>>) -> (i32, i32) {
    %c0_i32 = arith.constant 0 : i32
    %c0_i32_0 = arith.constant 0 : i32
    %c0_i32_1 = arith.constant 0 : i32
    return %c0_i32, %c0_i32_0 : i32, i32
  }
  func.func @transform_2(%arg0: i32, %arg1: memref<1xi32, #tpu.memory_space<smem>>) -> (i32, i32) {
    %c0_i32 = arith.constant 0 : i32
    %c0_i32_0 = arith.constant 0 : i32
    %c0_i32_1 = arith.constant 0 : i32
    return %c0_i32, %c0_i32_0 : i32, i32
  }
  func.func @transform_3(%arg0: i32, %arg1: memref<1xi32, #tpu.memory_space<smem>>) -> (i32, i32) {
    %c0_i32 = arith.constant 0 : i32
    %c0_i32_0 = arith.constant 0 : i32
    %c0_i32_1 = arith.constant 0 : i32
    return %c0_i32, %c0_i32_0 : i32, i32
  }
  func.func @transform_4(%arg0: i32, %arg1: memref<1xi32, #tpu.memory_space<smem>>) -> (i32, i32) {
    %c0_i32 = arith.constant 0 : i32
    %c0_i32_0 = arith.constant 0 : i32
    %c0_i32_1 = arith.constant 0 : i32
    return %c0_i32, %c0_i32_0 : i32, i32
  }
  func.func @transform_5(%arg0: i32, %arg1: memref<1xi32, #tpu.memory_space<smem>>) -> (i32, i32) {
    %c0_i32 = arith.constant 0 : i32
    %c0_i32_0 = arith.constant 0 : i32
    %c0_i32_1 = arith.constant 0 : i32
    return %c0_i32, %c0_i32_0 : i32, i32
  }
  func.func @transform_6(%arg0: i32, %arg1: memref<1xi32, #tpu.memory_space<smem>>) -> (i32, i32) {
    %c0_i32 = arith.constant 0 : i32
    %c0_i32_0 = arith.constant 0 : i32
    %c0_i32_1 = arith.constant 0 : i32
    return %c0_i32, %c0_i32_0 : i32, i32
  }
  func.func @transform_7(%arg0: i32, %arg1: memref<1xi32, #tpu.memory_space<smem>>) -> (i32, i32) {
    %c0_i32 = arith.constant 0 : i32
    %c0_i32_0 = arith.constant 0 : i32
    %c0_i32_1 = arith.constant 0 : i32
    return %c0_i32, %c0_i32_0 : i32, i32
  }
  func.func @transform_8(%arg0: i32, %arg1: memref<1xi32, #tpu.memory_space<smem>>) -> (i32, i32) {
    %c0_i32 = arith.constant 0 : i32
    %c0_i32_0 = arith.constant 0 : i32
    %c0_i32_1 = arith.constant 0 : i32
    return %c0_i32, %c0_i32_0 : i32, i32
  }
  func.func @transform_9(%arg0: i32, %arg1: memref<1xi32, #tpu.memory_space<smem>>) -> (i32, i32) {
    %c0_i32 = arith.constant 0 : i32
    %c0_i32_0 = arith.constant 0 : i32
    %c0_i32_1 = arith.constant 0 : i32
    return %c0_i32, %c0_i32_0 : i32, i32
  }
}

</mosaic_0001>

<llo_original>
// kernel: tpu_custom_call.1
$region0: #{tpu_custom_call.1}
  #allocation0 [shape = 'u32[]', space=smem, size = 0x4, offset = 0x4, fixed_abs, tag = 'smem constant byte address 0x4 - core index']
  #allocation1 [shape = 'u32[144,128]{1,0:T(1,128)}', space=vmem, size = 0x12000, scoped, tag = 'internal scratch']
  #allocation2 [shape = 'f32[8,64]{1,0:T(8,128)}', space=vmem, size = 0x1000, scoped, tag = 'scratch operand']
  #allocation3 [shape = 'f32[8,64]{1,0:T(8,128)}', space=vmem, size = 0x1000, scoped, tag = 'scratch operand']
  #allocation4 [shape = 'f32[8,64]{1,0:T(8,128)}', space=vmem, size = 0x1000, scoped, tag = 'scratch operand']
  #allocation5 [shape = 'f32[8,64]{1,0:T(8,128)}', space=vmem, size = 0x1000, scoped, tag = 'scratch operand']
  #allocation6 [shape = 's32[1]{0}', space=sflag, size = 0x4, scoped, tag = 'scoped memory for tpu_custom_call.1']
  #allocation7 [shape = 's32[1]{0:T(128)S(6)}', space=smem, size = 0x200, scoped, tag = 'prefetched SMEM operand 0']
  %s0 = inlined_call_operand.<no memory space> [shape: s32[1], index: 0, kind: input, shape index: {}]
  %s1 = inlined_call_operand.vmem [shape: f32[8,8,192], index: 1, kind: input, shape index: {}]
  %s2 = inlined_call_operand.hbm [shape: f32[64,192], index: 2, kind: input, shape index: {}]
  %s3 = inlined_call_operand.hbm [shape: f32[128,256], index: 3, kind: input, shape index: {}]
  %s4 = inlined_call_operand.vmem [shape: f32[8,64], index: 4, kind: input, shape index: {}]
  %s5 = inlined_call_operand.vmem [shape: f32[8,256], index: 5, kind: input, shape index: {}]
  %s6 = inlined_call_operand.vmem [shape: s32[8,1], index: 6, kind: input, shape index: {}]
  %s7 = inlined_call_operand.vmem [shape: f32[8,1], index: 7, kind: input, shape index: {}]
  %s8 = inlined_call_operand.vmem [shape: f32[128,3], index: 8, kind: input, shape index: {}]
  %s9 = inlined_call_operand.vmem [shape: f32[1,3], index: 9, kind: input, shape index: {}]
  %s10 = inlined_call_operand.vmem [shape: f32[8,3], index: 10, kind: output, shape index: {}]
  %s11 = sld [smem:[#allocation0]]
  $region66: #{tpu_custom_call.1} parent=0
    _
  %s13 = ssub.s32 1, %s11
  %s14 = scalar_select 0, %s13, %s11
  %15 = sst [smem:[#allocation7]] %s0
  $region1: #{tpu_custom_call.1} parent=0
    #allocation8 [shape = 'u8[65536]{0}', space=vmem, size = 0x10000, scoped, tag = 'input window, operand 2, single buffered']
    #allocation9 [shape = 's32[1]{0}', space=sflag, size = 0x4, scoped, tag = 'scoped memory for tpu_custom_call.1']
    #allocation10 [shape = 'u8[131072]{0}', space=vmem, size = 0x20000, scoped, tag = 'input window, operand 3, single buffered']
    #allocation11 [shape = 's32[1]{0}', space=sflag, size = 0x4, scoped, tag = 'scoped memory for tpu_custom_call.1']
    %16 = vsyncpa [#allocation9], 0
    %17 = vsyncpa [#allocation11], 0
    // Predicated region
    $region2: #{tpu_custom_call.1} parent=1 // pred_check
      _
    $region3: #{tpu_custom_call.1} parent=1 // pred_check_branch
      %19 = sbr.rel (0) target = $region5
    $region4: #{tpu_custom_call.1} parent=1 // pred_region
      _
    $region5: #{tpu_custom_call.1} parent=1 // pred_fallthru
      _
    // Predicated region
    $region6: #{tpu_custom_call.1} parent=1 // pred_check
      _
    $region7: #{tpu_custom_call.1} parent=1 // pred_check_branch
      %21 = sbr.rel (0) target = $region9
    $region8: #{tpu_custom_call.1} parent=1 // pred_region
      %s23 = ssub.s32 2048, 2048
      %24 = vsyncadd [#allocation9], %s23
      %s25 = sshll.u32 [#allocation8], 4
      %s26 = int_to_ptr.vmem [resolvable:$true] %s25
      %31 = dma.hbm_to_vmem [thread:$0]  %s2, 2048, %s26, [#allocation9], 256, 256, 16
    $region9: #{tpu_custom_call.1} parent=1 // pred_fallthru
      _
    // Predicated region
    $region10: #{tpu_custom_call.1} parent=1 // pred_check
      _
    $region11: #{tpu_custom_call.1} parent=1 // pred_check_branch
      %33 = sbr.rel (0) target = $region13
    $region12: #{tpu_custom_call.1} parent=1 // pred_region
      %s35 = ssub.s32 4096, 4096
      %36 = vsyncadd [#allocation11], %s35
      %s37 = sshll.u32 [#allocation10], 4
      %s38 = int_to_ptr.vmem [resolvable:$true] %s37
      %43 = dma.hbm_to_vmem [thread:$0]  %s3, 4096, %s38, [#allocation11], 256, 256, 16
    $region13: #{tpu_custom_call.1} parent=1 // pred_fallthru
      _
    // Predicated region
    $region14: #{tpu_custom_call.1} parent=1 // pred_check
      _
    $region15: #{tpu_custom_call.1} parent=1 // pred_check_branch
      %45 = sbr.rel (0) target = $region17
    $region16: #{tpu_custom_call.1} parent=1 // pred_region
      _
    $region17: #{tpu_custom_call.1} parent=1 // pred_fallthru
      _
    // Predicated region
    $region18: #{tpu_custom_call.1} parent=1 // pred_check
      _
    $region19: #{tpu_custom_call.1} parent=1 // pred_check_branch
      %47 = sbr.rel (0) target = $region21
    $region20: #{tpu_custom_call.1} parent=1 // pred_region
      _
    $region21: #{tpu_custom_call.1} parent=1 // pred_fallthru
      _
    // Predicated region
    $region22: #{tpu_custom_call.1} parent=1 // pred_check
      _
    $region23: #{tpu_custom_call.1} parent=1 // pred_check_branch
      %49 = sbr.rel (0) target = $region25
    $region24: #{tpu_custom_call.1} parent=1 // pred_region
      _
    $region25: #{tpu_custom_call.1} parent=1 // pred_fallthru
      _
    // Predicated region
    $region26: #{tpu_custom_call.1} parent=1 // pred_check
      _
    $region27: #{tpu_custom_call.1} parent=1 // pred_check_branch
      %51 = sbr.rel (0) target = $region29
    $region28: #{tpu_custom_call.1} parent=1 // pred_region
      _
    $region29: #{tpu_custom_call.1} parent=1 // pred_fallthru
      _
    // Predicated region
    $region30: #{tpu_custom_call.1} parent=1 // pred_check
      _
    $region31: #{tpu_custom_call.1} parent=1 // pred_check_branch
      %53 = sbr.rel (0) target = $region33
    $region32: #{tpu_custom_call.1} parent=1 // pred_region
      _
    $region33: #{tpu_custom_call.1} parent=1 // pred_fallthru
      _
    // Predicated region
    $region34: #{tpu_custom_call.1} parent=1 // pred_check
      _
    $region35: #{tpu_custom_call.1} parent=1 // pred_check_branch
      %55 = sbr.rel (0) target = $region37
    $region36: #{tpu_custom_call.1} parent=1 // pred_region
      _
    $region37: #{tpu_custom_call.1} parent=1 // pred_fallthru
      _
    // Predicated region
    $region38: #{tpu_custom_call.1} parent=1 // pred_check
      _
    $region39: #{tpu_custom_call.1} parent=1 // pred_check_branch
      %57 = sbr.rel (0) target = $region41
    $region40: #{tpu_custom_call.1} parent=1 // pred_region
      %58 = dma.done [#allocation9], 2048
    $region41: #{tpu_custom_call.1} parent=1 // pred_fallthru
      _
    // Predicated region
    $region42: #{tpu_custom_call.1} parent=1 // pred_check
      _
    $region43: #{tpu_custom_call.1} parent=1 // pred_check_branch
      %60 = sbr.rel (0) target = $region45
    $region44: #{tpu_custom_call.1} parent=1 // pred_region
      %61 = dma.done [#allocation11], 4096
    $region45: #{tpu_custom_call.1} parent=1 // pred_fallthru
      _
    %p62 = scmp.eq.s32.totalorder 0, 0
    // Predicated region
    $region46: #{tpu_custom_call.1} parent=1 // pred_check
      %p63 = pneg %p62
    $region47: #{tpu_custom_call.1} parent=1 // pred_check_branch
      %65 = sbr.rel (%p63) target = $region49
    $region48: #{tpu_custom_call.1} parent=1 // pred_region
      %vm66 = vcmask 523264
      %67 = vst.msk [vmem:[#allocation2] sm:$0xff] %vm66, 0.0
      %68 = vst.msk [vmem:[#allocation3] sm:$0xff] %vm66, 0.0
      %69 = vst.msk [vmem:[#allocation5] sm:$0xff] %vm66, 0.0
      %70 = vst.msk [vmem:[#allocation4] sm:$0xff] %vm66, -1e+30
    $region49: #{tpu_custom_call.1} parent=1 // pred_fallthru
      _
    %s71 = smul.u32 0, 8
    %s72 = sld [smem:[#allocation7]]
    %p73 = scmp.lt.s32.totalorder %s71, %s72
    // Predicated region
    $region50: #{tpu_custom_call.1} parent=1 // pred_check
      %p74 = pneg %p73
    $region51: #{tpu_custom_call.1} parent=1 // pred_check_branch
      %76 = sbr.rel (%p74) target = $region53
    $region52: #{tpu_custom_call.1} parent=1 // pred_region
      %v77 = vld [vmem:[#allocation8] sm:$0xff]
      %v78 = vld [vmem:[#allocation8 + $0x8] sm:$0xff]
      %v79 = vld [vmem:[#allocation8 + $0x10] sm:$0xff]
      %v80 = vld [vmem:[#allocation8 + $0x18] sm:$0xff]
      %v81 = vld [vmem:[#allocation8 + $0x20] sm:$0xff]
      %v82 = vld [vmem:[#allocation8 + $0x28] sm:$0xff]
      %v83 = vld [vmem:[#allocation8 + $0x30] sm:$0xff]
      %v84 = vld [vmem:[#allocation8 + $0x38] sm:$0xff]
      %v85 = vld [vmem:[#allocation8 + $0x40] sm:$0xff]
      %v86 = vld [vmem:[#allocation8 + $0x48] sm:$0xff]
      %v87 = vld [vmem:[#allocation8 + $0x50] sm:$0xff]
      %v88 = vld [vmem:[#allocation8 + $0x58] sm:$0xff]
      %v89 = vld [vmem:[#allocation8 + $0x60] sm:$0xff]
      %v90 = vld [vmem:[#allocation8 + $0x68] sm:$0xff]
      %v91 = vld [vmem:[#allocation8 + $0x70] sm:$0xff]
      %v92 = vld [vmem:[#allocation8 + $0x78] sm:$0xff]
      %v93 = vld [vmem:[#allocation10] sm:$0xff]
      %v94 = vld [vmem:[#allocation10 + $0x8] sm:$0xff]
      %v95 = vld [vmem:[#allocation10 + $0x10] sm:$0xff]
      %v96 = vld [vmem:[#allocation10 + $0x18] sm:$0xff]
      %v97 = vld [vmem:[#allocation10 + $0x20] sm:$0xff]
      %v98 = vld [vmem:[#allocation10 + $0x28] sm:$0xff]
      %v99 = vld [vmem:[#allocation10 + $0x30] sm:$0xff]
      %v100 = vld [vmem:[#allocation10 + $0x38] sm:$0xff]
      %v101 = vld [vmem:[#allocation10 + $0x40] sm:$0xff]
      %v102 = vld [vmem:[#allocation10 + $0x48] sm:$0xff]
      %v103 = vld [vmem:[#allocation10 + $0x50] sm:$0xff]
      %v104 = vld [vmem:[#allocation10 + $0x58] sm:$0xff]
      %v105 = vld [vmem:[#allocation10 + $0x60] sm:$0xff]
      %v106 = vld [vmem:[#allocation10 + $0x68] sm:$0xff]
      %v107 = vld [vmem:[#allocation10 + $0x70] sm:$0xff]
      %v108 = vld [vmem:[#allocation10 + $0x78] sm:$0xff]
      %v109 = vld [vmem:[#allocation10 + $0x80] sm:$0xff]
      %v110 = vld [vmem:[#allocation10 + $0x88] sm:$0xff]
      %v111 = vld [vmem:[#allocation10 + $0x90] sm:$0xff]
      %v112 = vld [vmem:[#allocation10 + $0x98] sm:$0xff]
      %v113 = vld [vmem:[#allocation10 + $0xa0] sm:$0xff]
      %v114 = vld [vmem:[#allocation10 + $0xa8] sm:$0xff]
      %v115 = vld [vmem:[#allocation10 + $0xb0] sm:$0xff]
      %v116 = vld [vmem:[#allocation10 + $0xb8] sm:$0xff]
      %v117 = vld [vmem:[#allocation10 + $0xc0] sm:$0xff]
      %v118 = vld [vmem:[#allocation10 + $0xc8] sm:$0xff]
      %v119 = vld [vmem:[#allocation10 + $0xd0] sm:$0xff]
      %v120 = vld [vmem:[#allocation10 + $0xd8] sm:$0xff]
      %v121 = vld [vmem:[#allocation10 + $0xe0] sm:$0xff]
      %v122 = vld [vmem:[#allocation10 + $0xe8] sm:$0xff]
      %v123 = vld [vmem:[#allocation10 + $0xf0] sm:$0xff]
      %v124 = vld [vmem:[#allocation10 + $0xf8] sm:$0xff]
      %v125 = vld [vmem:[%s4] sm:$0xff]
      %v126 = vld [vmem:[%s5] sm:$0xff]
      %v127 = vld [vmem:[%s5 + $0x8] sm:$0xff]
      %v128 = vld [vmem:[%s6] sm:$0xff]
      %v129 = vstv %s71
      %v130 = vsub.s32 %v128, %v129
      %v131 = vld [vmem:[#allocation2] sm:$0xff]
      %v132 = vld [vmem:[#allocation3] sm:$0xff]
      %v133 = vld [vmem:[#allocation4] sm:$0xff]
      %v134 = vld [vmem:[#allocation5] sm:$0xff]
      %v135 = vld [vmem:[%s1] sm:$0xff]
      %v136 = vld [vmem:[%s1 + $0x8] sm:$0xff]
      %vm137 = vcmask 523264
      %v139 = vsel %vm137, %v131, 0
      %141 = vmatprep.subr.mxu0 %v78
      %142 = vmatpush1.msra.mxu0 %v77
      %143 = vmatprep.subr.mxu0 %v80
      %144 = vmatpush1.msra.mxu0 %v79
      %145 = vmatprep.subr.mxu0 %v82
      %146 = vmatpush1.msra.mxu0 %v81
      %147 = vmatprep.subr.mxu0 %v84
      %148 = vmatpush1.msra.mxu0 %v83
      %149 = vmatprep.subr.mxu0 %v86
      %150 = vmatpush1.msra.mxu0 %v85
      %151 = vmatprep.subr.mxu0 %v88
      %152 = vmatpush1.msra.mxu0 %v87
      %153 = vmatprep.subr.mxu0 %v90
      %154 = vmatpush1.msra.mxu0 %v89
      %155 = vmatprep.subr.mxu0 %v92
      %156 = vmatpush1.msra.mxu0 %v91
      %157 = vmatprep.subr.mxu0 0.0
      %158 = vmatpush1.msra.mxu0 0.0
      %159 = vmatprep.subr.mxu0 0.0
      %160 = vmatpush1.msra.mxu0 0.0
      %161 = vmatprep.subr.mxu0 0.0
      %162 = vmatpush1.msra.mxu0 0.0
      %163 = vmatprep.subr.mxu0 0.0
      %164 = vmatpush1.msra.mxu0 0.0
      %165 = vmatprep.subr.mxu0 0.0
      %166 = vmatpush1.msra.mxu0 0.0
      %167 = vmatprep.subr.mxu0 0.0
      %168 = vmatpush1.msra.mxu0 0.0
      %169 = vmatprep.subr.mxu0 0.0
      %170 = vmatpush1.msra.mxu0 0.0
      %171 = vmatprep.subr.mxu0 0.0
      %172 = vmatpush1.msra.mxu0 0.0
      %173 = vmatprep.subr.mxu0 0.0
      %174 = vmatpush1.msra.mxu0 0.0
      %175 = vmatprep.subr.mxu0 0.0
      %176 = vmatpush1.msra.mxu0 0.0
      %177 = vmatprep.subr.mxu0 0.0
      %178 = vmatpush1.msra.mxu0 0.0
      %179 = vmatprep.subr.mxu0 0.0
      %180 = vmatpush1.msra.mxu0 0.0
      %181 = vmatprep.subr.mxu0 0.0
      %182 = vmatpush1.msra.mxu0 0.0
      %183 = vmatprep.subr.mxu0 0.0
      %184 = vmatpush1.msra.mxu0 0.0
      %185 = vmatprep.subr.mxu0 0.0
      %186 = vmatpush1.msra.mxu0 0.0
      %187 = vmatprep.subr.mxu0 0.0
      %188 = vmatpush1.msra.mxu0 0.0
      %189 = vmatprep.subr.mxu0 0.0
      %190 = vmatpush1.msra.mxu0 0.0
      %191 = vmatprep.subr.mxu0 0.0
      %192 = vmatpush1.msra.mxu0 0.0
      %193 = vmatprep.subr.mxu0 0.0
      %194 = vmatpush1.msra.mxu0 0.0
      %195 = vmatprep.subr.mxu0 0.0
      %196 = vmatpush1.msra.mxu0 0.0
      %197 = vmatprep.subr.mxu0 0.0
      %198 = vmatpush1.msra.mxu0 0.0
      %199 = vmatprep.subr.mxu0 0.0
      %200 = vmatpush1.msra.mxu0 0.0
      %201 = vmatprep.subr.mxu0 0.0
      %202 = vmatpush1.msra.mxu0 0.0
      %203 = vmatprep.subr.mxu0 0.0
      %204 = vmatpush1.msra.mxu0 0.0
      %205 = vmatprep.mubr.f32.mxu0 0.0
      %206 = vmatmul.mubr.f32.gmra.mrb[0].mxu0 %v139
      %v207 = vpop.f32.mrb[0].mxu0
      %v208 = vadd.f32 0.0, %v207
      %v209 = vpop.f32.mrb[0].mxu0
      %v210 = vadd.f32 0.0, %v209
      %211 = vdwg.mxu0
      %v212 = vadd.f32 %v135, %v208
      %v213 = vxor.u32 %v212, 2147483648
      %v214 = vmul.f32 %v213, 1.442695
      %v215 = vpow.pop %v214
      %v216 = vadd.f32 %v215, 1.0
      %v217 = vrcp.pop %v216
      %v218 = vmul.f32 1.0, %v217
      %v219 = vadd.f32 %v210, %v125
      %v220 = vmul.f32 %v218, %v219
      %v221 = vadd.f32 %v136, %v220
      %v222 = vtanh.pop %v221
      %v223 = vsub.f32 1.0, %v218
      %225 = vrot.lane.b32.xlu0 %v222, 64
      %v226 = vpop.permute.xlu0 %225
      %v228 = vmul.f32 %v223, %v226
      %229 = vrot.lane.b32.xlu0 %v131, 64
      %v230 = vpop.permute.xlu0 %229
      %v232 = vmul.f32 %v218, %v230
      %v233 = vadd.f32 %v228, %v232
      %235 = vrot.lane.b32.xlu0 %v233, 64
      %v236 = vpop.permute.xlu0 %235
      %239 = vrot.lane.b32.xlu0 %v132, 64
      %v240 = vpop.permute.xlu0 %239
      %v242 = vsel %vm137, %v236, %v240
      %243 = vmatprep.subr.mxu0 %v94
      %244 = vmatpush1.msra.mxu0 %v93
      %245 = vmatprep.subr.mxu0 %v96
      %246 = vmatpush1.msra.mxu0 %v95
      %247 = vmatprep.subr.mxu0 %v98
      %248 = vmatpush1.msra.mxu0 %v97
      %249 = vmatprep.subr.mxu0 %v100
      %250 = vmatpush1.msra.mxu0 %v99
      %251 = vmatprep.subr.mxu0 %v102
      %252 = vmatpush1.msra.mxu0 %v101
      %253 = vmatprep.subr.mxu0 %v104
      %254 = vmatpush1.msra.mxu0 %v103
      %255 = vmatprep.subr.mxu0 %v106
      %256 = vmatpush1.msra.mxu0 %v105
      %257 = vmatprep.subr.mxu0 %v108
      %258 = vmatpush1.msra.mxu0 %v107
      %259 = vmatprep.subr.mxu0 %v110
      %260 = vmatpush1.msra.mxu0 %v109
      %261 = vmatprep.subr.mxu0 %v112
      %262 = vmatpush1.msra.mxu0 %v111
      %263 = vmatprep.subr.mxu0 %v114
      %264 = vmatpush1.msra.mxu0 %v113
      %265 = vmatprep.subr.mxu0 %v116
      %266 = vmatpush1.msra.mxu0 %v115
      %267 = vmatprep.subr.mxu0 %v118
      %268 = vmatpush1.msra.mxu0 %v117
      %269 = vmatprep.subr.mxu0 %v120
      %270 = vmatpush1.msra.mxu0 %v119
      %271 = vmatprep.subr.mxu0 %v122
      %272 = vmatpush1.msra.mxu0 %v121
      %273 = vmatprep.subr.mxu0 %v124
      %274 = vmatpush1.msra.mxu0 %v123
      %275 = vmatprep.subr.mxu0 0.0
      %276 = vmatpush1.msra.mxu0 0.0
      %277 = vmatprep.subr.mxu0 0.0
      %278 = vmatpush1.msra.mxu0 0.0
      %279 = vmatprep.subr.mxu0 0.0
      %280 = vmatpush1.msra.mxu0 0.0
      %281 = vmatprep.subr.mxu0 0.0
      %282 = vmatpush1.msra.mxu0 0.0
      %283 = vmatprep.subr.mxu0 0.0
      %284 = vmatpush1.msra.mxu0 0.0
      %285 = vmatprep.subr.mxu0 0.0
      %286 = vmatpush1.msra.mxu0 0.0
      %287 = vmatprep.subr.mxu0 0.0
      %288 = vmatpush1.msra.mxu0 0.0
      %289 = vmatprep.subr.mxu0 0.0
      %290 = vmatpush1.msra.mxu0 0.0
      %291 = vmatprep.subr.mxu0 0.0
      %292 = vmatpush1.msra.mxu0 0.0
      %293 = vmatprep.subr.mxu0 0.0
      %294 = vmatpush1.msra.mxu0 0.0
      %295 = vmatprep.subr.mxu0 0.0
      %296 = vmatpush1.msra.mxu0 0.0
      %297 = vmatprep.subr.mxu0 0.0
      %298 = vmatpush1.msra.mxu0 0.0
      %299 = vmatprep.subr.mxu0 0.0
      %300 = vmatpush1.msra.mxu0 0.0
      %301 = vmatprep.subr.mxu0 0.0
      %302 = vmatpush1.msra.mxu0 0.0
      %303 = vmatprep.subr.mxu0 0.0
      %304 = vmatpush1.msra.mxu0 0.0
      %305 = vmatprep.subr.mxu0 0.0
      %306 = vmatpush1.msra.mxu0 0.0
      %307 = vmatprep.mubr.f32.mxu0 0.0
      %308 = vmatmul.mubr.f32.gmra.mrb[0].mxu0 %v242
      %v309 = vpop.f32.mrb[0].mxu0
      %v310 = vadd.f32 %v126, %v309
      %v311 = vpop.f32.mrb[0].mxu0
      %v312 = vadd.f32 %v127, %v311
      %313 = vdwg.mxu0
      %v314 = vxor.u32 %v310, 2147483648
      %v315 = vmul.f32 %v314, 1.442695
      %v316 = vpow.pop %v315
      %v317 = vadd.f32 %v316, 1.0
      %v318 = vrcp.pop %v317
      %v319 = vmul.f32 1.0, %v318
      %321 = vrot.lane.b32.xlu0 %v312, 64
      %v322 = vpop.permute.xlu0 %321
      %v324 = vmul.f32 %v319, %v322
      %v325 = vadd.f32 %v312, %v324
      %v326 = vtanh.pop %v325
      %v327 = vsub.f32 1.0, %v319
      %329 = vrot.lane.b32.xlu0 %v326, 64
      %v330 = vpop.permute.xlu0 %329
      %v332 = vmul.f32 %v327, %v330
      %v333 = vmul.f32 %v319, %v240
      %v334 = vadd.f32 %v332, %v333
      %vm335 = vcmp.gt.s32.totalorder %v130, 0
      %337 = vrot.lane.b32.xlu0 %v334, 64
      %v338 = vpop.permute.xlu0 %337
      %v340 = vmax.f32 %v133, %v338
      %v341 = vsel %vm335, 1, 0
      %342 = vset.pattern.permute.xlu0 0
      %343 = vperm.xlu0 %342, %v341
      %v344 = vpop.permute.xlu0 %343
      %vm345 = vcmp.eq.s32.totalorder %v344, 1
      %v346 = vsel %vm345, %v340, %v133
      %v347 = vadd.f32 %v134, %v338
      %v348 = vsel %vm345, %v347, %v134
      %s349 = scalar_lea.vmem %s1, 16
      %v350 = vld [vmem:[%s349] sm:$0xff]
      %v351 = vld [vmem:[%s349 + $0x8] sm:$0xff]
      %v352 = vsel %vm137, %v236, 0
      %354 = vmatprep.subr.mxu0 %v78
      %355 = vmatpush1.msra.mxu0 %v77
      %356 = vmatprep.subr.mxu0 %v80
      %357 = vmatpush1.msra.mxu0 %v79
      %358 = vmatprep.subr.mxu0 %v82
      %359 = vmatpush1.msra.mxu0 %v81
      %360 = vmatprep.subr.mxu0 %v84
      %361 = vmatpush1.msra.mxu0 %v83
      %362 = vmatprep.subr.mxu0 %v86
      %363 = vmatpush1.msra.mxu0 %v85
      %364 = vmatprep.subr.mxu0 %v88
      %365 = vmatpush1.msra.mxu0 %v87
      %366 = vmatprep.subr.mxu0 %v90
      %367 = vmatpush1.msra.mxu0 %v89
      %368 = vmatprep.subr.mxu0 %v92
      %369 = vmatpush1.msra.mxu0 %v91
      %370 = vmatprep.subr.mxu0 0.0
      %371 = vmatpush1.msra.mxu0 0.0
      %372 = vmatprep.subr.mxu0 0.0
      %373 = vmatpush1.msra.mxu0 0.0
      %374 = vmatprep.subr.mxu0 0.0
      %375 = vmatpush1.msra.mxu0 0.0
      %376 = vmatprep.subr.mxu0 0.0
      %377 = vmatpush1.msra.mxu0 0.0
      %378 = vmatprep.subr.mxu0 0.0
      %379 = vmatpush1.msra.mxu0 0.0
      %380 = vmatprep.subr.mxu0 0.0
      %381 = vmatpush1.msra.mxu0 0.0
      %382 = vmatprep.subr.mxu0 0.0
      %383 = vmatpush1.msra.mxu0 0.0
      %384 = vmatprep.subr.mxu0 0.0
      %385 = vmatpush1.msra.mxu0 0.0
      %386 = vmatprep.subr.mxu0 0.0
      %387 = vmatpush1.msra.mxu0 0.0
      %388 = vmatprep.subr.mxu0 0.0
      %389 = vmatpush1.msra.mxu0 0.0
      %390 = vmatprep.subr.mxu0 0.0
      %391 = vmatpush1.msra.mxu0 0.0
      %392 = vmatprep.subr.mxu0 0.0
      %393 = vmatpush1.msra.mxu0 0.0
      %394 = vmatprep.subr.mxu0 0.0
      %395 = vmatpush1.msra.mxu0 0.0
      %396 = vmatprep.subr.mxu0 0.0
      %397 = vmatpush1.msra.mxu0 0.0
      %398 = vmatprep.subr.mxu0 0.0
      %399 = vmatpush1.msra.mxu0 0.0
      %400 = vmatprep.subr.mxu0 0.0
      %401 = vmatpush1.msra.mxu0 0.0
      %402 = vmatprep.subr.mxu0 0.0
      %403 = vmatpush1.msra.mxu0 0.0
      %404 = vmatprep.subr.mxu0 0.0
      %405 = vmatpush1.msra.mxu0 0.0
      %406 = vmatprep.subr.mxu0 0.0
      %407 = vmatpush1.msra.mxu0 0.0
      %408 = vmatprep.subr.mxu0 0.0
      %409 = vmatpush1.msra.mxu0 0.0
      %410 = vmatprep.subr.mxu0 0.0
      %411 = vmatpush1.msra.mxu0 0.0
      %412 = vmatprep.subr.mxu0 0.0
      %413 = vmatpush1.msra.mxu0 0.0
      %414 = vmatprep.subr.mxu0 0.0
      %415 = vmatpush1.msra.mxu0 0.0
      %416 = vmatprep.subr.mxu0 0.0
      %417 = vmatpush1.msra.mxu0 0.0
      %418 = vmatprep.mubr.f32.mxu0 0.0
      %419 = vmatmul.mubr.f32.gmra.mrb[0].mxu0 %v352
      %v420 = vpop.f32.mrb[0].mxu0
      %v421 = vadd.f32 0.0, %v420
      %v422 = vpop.f32.mrb[0].mxu0
      %v423 = vadd.f32 0.0, %v422
      %424 = vdwg.mxu0
      %v425 = vadd.f32 %v350, %v421
      %v426 = vxor.u32 %v425, 2147483648
      %v427 = vmul.f32 %v426, 1.442695
      %v428 = vpow.pop %v427
      %v429 = vadd.f32 %v428, 1.0
      %v430 = vrcp.pop %v429
      %v431 = vmul.f32 1.0, %v430
      %v432 = vadd.f32 %v423, %v125
      %v433 = vmul.f32 %v431, %v432
      %v434 = vadd.f32 %v351, %v433
      %v435 = vtanh.pop %v434
      %v436 = vsub.f32 1.0, %v431
      %438 = vrot.lane.b32.xlu0 %v435, 64
      %v439 = vpop.permute.xlu0 %438
      %v441 = vmul.f32 %v436, %v439
      %v442 = vmul.f32 %v431, %v233
      %v443 = vadd.f32 %v441, %v442
      %445 = vrot.lane.b32.xlu0 %v443, 64
      %v446 = vpop.permute.xlu0 %445
      %v448 = vsel %vm137, %v446, %v334
      %449 = vmatprep.subr.mxu0 %v94
      %450 = vmatpush1.msra.mxu0 %v93
      %451 = vmatprep.subr.mxu0 %v96
      %452 = vmatpush1.msra.mxu0 %v95
      %453 = vmatprep.subr.mxu0 %v98
      %454 = vmatpush1.msra.mxu0 %v97
      %455 = vmatprep.subr.mxu0 %v100
      %456 = vmatpush1.msra.mxu0 %v99
      %457 = vmatprep.subr.mxu0 %v102
      %458 = vmatpush1.msra.mxu0 %v101
      %459 = vmatprep.subr.mxu0 %v104
      %460 = vmatpush1.msra.mxu0 %v103
      %461 = vmatprep.subr.mxu0 %v106
      %462 = vmatpush1.msra.mxu0 %v105
      %463 = vmatprep.subr.mxu0 %v108
      %464 = vmatpush1.msra.mxu0 %v107
      %465 = vmatprep.subr.mxu0 %v110
      %466 = vmatpush1.msra.mxu0 %v109
      %467 = vmatprep.subr.mxu0 %v112
      %468 = vmatpush1.msra.mxu0 %v111
      %469 = vmatprep.subr.mxu0 %v114
      %470 = vmatpush1.msra.mxu0 %v113
      %471 = vmatprep.subr.mxu0 %v116
      %472 = vmatpush1.msra.mxu0 %v115
      %473 = vmatprep.subr.mxu0 %v118
      %474 = vmatpush1.msra.mxu0 %v117
      %475 = vmatprep.subr.mxu0 %v120
      %476 = vmatpush1.msra.mxu0 %v119
      %477 = vmatprep.subr.mxu0 %v122
      %478 = vmatpush1.msra.mxu0 %v121
      %479 = vmatprep.subr.mxu0 %v124
      %480 = vmatpush1.msra.mxu0 %v123
      %481 = vmatprep.subr.mxu0 0.0
      %482 = vmatpush1.msra.mxu0 0.0
      %483 = vmatprep.subr.mxu0 0.0
      %484 = vmatpush1.msra.mxu0 0.0
      %485 = vmatprep.subr.mxu0 0.0
      %486 = vmatpush1.msra.mxu0 0.0
      %487 = vmatprep.subr.mxu0 0.0
      %488 = vmatpush1.msra.mxu0 0.0
      %489 = vmatprep.subr.mxu0 0.0
      %490 = vmatpush1.msra.mxu0 0.0
      %491 = vmatprep.subr.mxu0 0.0
      %492 = vmatpush1.msra.mxu0 0.0
      %493 = vmatprep.subr.mxu0 0.0
      %494 = vmatpush1.msra.mxu0 0.0
      %495 = vmatprep.subr.mxu0 0.0
      %496 = vmatpush1.msra.mxu0 0.0
      %497 = vmatprep.subr.mxu0 0.0
      %498 = vmatpush1.msra.mxu0 0.0
      %499 = vmatprep.subr.mxu0 0.0
      %500 = vmatpush1.msra.mxu0 0.0
      %501 = vmatprep.subr.mxu0 0.0
      %502 = vmatpush1.msra.mxu0 0.0
      %503 = vmatprep.subr.mxu0 0.0
      %504 = vmatpush1.msra.mxu0 0.0
      %505 = vmatprep.subr.mxu0 0.0
      %506 = vmatpush1.msra.mxu0 0.0
      %507 = vmatprep.subr.mxu0 0.0
      %508 = vmatpush1.msra.mxu0 0.0
      %509 = vmatprep.subr.mxu0 0.0
      %510 = vmatpush1.msra.mxu0 0.0
      %511 = vmatprep.subr.mxu0 0.0
      %512 = vmatpush1.msra.mxu0 0.0
      %513 = vmatprep.mubr.f32.mxu0 0.0
      %514 = vmatmul.mubr.f32.gmra.mrb[0].mxu0 %v448
      %v515 = vpop.f32.mrb[0].mxu0
      %v516 = vadd.f32 %v126, %v515
      %v517 = vpop.f32.mrb[0].mxu0
      %v518 = vadd.f32 %v127, %v517
      %519 = vdwg.mxu0
      %v520 = vxor.u32 %v516, 2147483648
      %v521 = vmul.f32 %v520, 1.442695
      %v522 = vpow.pop %v521
      %v523 = vadd.f32 %v522, 1.0
      %v524 = vrcp.pop %v523
      %v525 = vmul.f32 1.0, %v524
      %527 = vrot.lane.b32.xlu0 %v518, 64
      %v528 = vpop.permute.xlu0 %527
      %v530 = vmul.f32 %v525, %v528
      %v531 = vadd.f32 %v518, %v530
      %v532 = vtanh.pop %v531
      %v533 = vsub.f32 1.0, %v525
      %535 = vrot.lane.b32.xlu0 %v532, 64
      %v536 = vpop.permute.xlu0 %535
      %v538 = vmul.f32 %v533, %v536
      %v539 = vmul.f32 %v525, %v334
      %v540 = vadd.f32 %v538, %v539
      %vm541 = vcmp.gt.s32.totalorder %v130, 1
      %543 = vrot.lane.b32.xlu0 %v540, 64
      %v544 = vpop.permute.xlu0 %543
      %v546 = vmax.f32 %v346, %v544
      %v547 = vsel %vm541, 1, 0
      %548 = vset.pattern.permute.xlu0 0
      %549 = vperm.xlu0 %548, %v547
      %v550 = vpop.permute.xlu0 %549
      %vm551 = vcmp.eq.s32.totalorder %v550, 1
      %v552 = vsel %vm551, %v546, %v346
      %v553 = vadd.f32 %v348, %v544
      %v554 = vsel %vm551, %v553, %v348
      %s555 = scalar_lea.vmem %s1, 32
      %v556 = vld [vmem:[%s555] sm:$0xff]
      %v557 = vld [vmem:[%s555 + $0x8] sm:$0xff]
      %v558 = vsel %vm137, %v446, 0
      %560 = vmatprep.subr.mxu0 %v78
      %561 = vmatpush1.msra.mxu0 %v77
      %562 = vmatprep.subr.mxu0 %v80
      %563 = vmatpush1.msra.mxu0 %v79
      %564 = vmatprep.subr.mxu0 %v82
      %565 = vmatpush1.msra.mxu0 %v81
      %566 = vmatprep.subr.mxu0 %v84
      %567 = vmatpush1.msra.mxu0 %v83
      %568 = vmatprep.subr.mxu0 %v86
      %569 = vmatpush1.msra.mxu0 %v85
      %570 = vmatprep.subr.mxu0 %v88
      %571 = vmatpush1.msra.mxu0 %v87
      %572 = vmatprep.subr.mxu0 %v90
      %573 = vmatpush1.msra.mxu0 %v89
      %574 = vmatprep.subr.mxu0 %v92
      %575 = vmatpush1.msra.mxu0 %v91
      %576 = vmatprep.subr.mxu0 0.0
      %577 = vmatpush1.msra.mxu0 0.0
      %578 = vmatprep.subr.mxu0 0.0
      %579 = vmatpush1.msra.mxu0 0.0
      %580 = vmatprep.subr.mxu0 0.0
      %581 = vmatpush1.msra.mxu0 0.0
      %582 = vmatprep.subr.mxu0 0.0
      %583 = vmatpush1.msra.mxu0 0.0
      %584 = vmatprep.subr.mxu0 0.0
      %585 = vmatpush1.msra.mxu0 0.0
      %586 = vmatprep.subr.mxu0 0.0
      %587 = vmatpush1.msra.mxu0 0.0
      %588 = vmatprep.subr.mxu0 0.0
      %589 = vmatpush1.msra.mxu0 0.0
      %590 = vmatprep.subr.mxu0 0.0
      %591 = vmatpush1.msra.mxu0 0.0
      %592 = vmatprep.subr.mxu0 0.0
      %593 = vmatpush1.msra.mxu0 0.0
      %594 = vmatprep.subr.mxu0 0.0
      %595 = vmatpush1.msra.mxu0 0.0
      %596 = vmatprep.subr.mxu0 0.0
      %597 = vmatpush1.msra.mxu0 0.0
      %598 = vmatprep.subr.mxu0 0.0
      %599 = vmatpush1.msra.mxu0 0.0
      %600 = vmatprep.subr.mxu0 0.0
      %601 = vmatpush1.msra.mxu0 0.0
      %602 = vmatprep.subr.mxu0 0.0
      %603 = vmatpush1.msra.mxu0 0.0
      %604 = vmatprep.subr.mxu0 0.0
      %605 = vmatpush1.msra.mxu0 0.0
      %606 = vmatprep.subr.mxu0 0.0
      %607 = vmatpush1.msra.mxu0 0.0
      %608 = vmatprep.subr.mxu0 0.0
      %609 = vmatpush1.msra.mxu0 0.0
      %610 = vmatprep.subr.mxu0 0.0
      %611 = vmatpush1.msra.mxu0 0.0
      %612 = vmatprep.subr.mxu0 0.0
      %613 = vmatpush1.msra.mxu0 0.0
      %614 = vmatprep.subr.mxu0 0.0
      %615 = vmatpush1.msra.mxu0 0.0
      %616 = vmatprep.subr.mxu0 0.0
      %617 = vmatpush1.msra.mxu0 0.0
      %618 = vmatprep.subr.mxu0 0.0
      %619 = vmatpush1.msra.mxu0 0.0
      %620 = vmatprep.subr.mxu0 0.0
      %621 = vmatpush1.msra.mxu0 0.0
      %622 = vmatprep.subr.mxu0 0.0
      %623 = vmatpush1.msra.mxu0 0.0
      %624 = vmatprep.mubr.f32.mxu0 0.0
      %625 = vmatmul.mubr.f32.gmra.mrb[0].mxu0 %v558
      %v626 = vpop.f32.mrb[0].mxu0
      %v627 = vadd.f32 0.0, %v626
      %v628 = vpop.f32.mrb[0].mxu0
      %v629 = vadd.f32 0.0, %v628
      %630 = vdwg.mxu0
      %v631 = vadd.f32 %v556, %v627
      %v632 = vxor.u32 %v631, 2147483648
      %v633 = vmul.f32 %v632, 1.442695
      %v634 = vpow.pop %v633
      %v635 = vadd.f32 %v634, 1.0
      %v636 = vrcp.pop %v635
      %v637 = vmul.f32 1.0, %v636
      %v638 = vadd.f32 %v629, %v125
      %v639 = vmul.f32 %v637, %v638
      %v640 = vadd.f32 %v557, %v639
      %v641 = vtanh.pop %v640
      %v642 = vsub.f32 1.0, %v637
      %644 = vrot.lane.b32.xlu0 %v641, 64
      %v645 = vpop.permute.xlu0 %644
      %v647 = vmul.f32 %v642, %v645
      %v648 = vmul.f32 %v637, %v443
      %v649 = vadd.f32 %v647, %v648
      %651 = vrot.lane.b32.xlu0 %v649, 64
      %v652 = vpop.permute.xlu0 %651
      %v654 = vsel %vm137, %v652, %v540
      %655 = vmatprep.subr.mxu0 %v94
      %656 = vmatpush1.msra.mxu0 %v93
      %657 = vmatprep.subr.mxu0 %v96
      %658 = vmatpush1.msra.mxu0 %v95
      %659 = vmatprep.subr.mxu0 %v98
      %660 = vmatpush1.msra.mxu0 %v97
      %661 = vmatprep.subr.mxu0 %v100
      %662 = vmatpush1.msra.mxu0 %v99
      %663 = vmatprep.subr.mxu0 %v102
      %664 = vmatpush1.msra.mxu0 %v101
      %665 = vmatprep.subr.mxu0 %v104
      %666 = vmatpush1.msra.mxu0 %v103
      %667 = vmatprep.subr.mxu0 %v106
      %668 = vmatpush1.msra.mxu0 %v105
      %669 = vmatprep.subr.mxu0 %v108
      %670 = vmatpush1.msra.mxu0 %v107
      %671 = vmatprep.subr.mxu0 %v110
      %672 = vmatpush1.msra.mxu0 %v109
      %673 = vmatprep.subr.mxu0 %v112
      %674 = vmatpush1.msra.mxu0 %v111
      %675 = vmatprep.subr.mxu0 %v114
      %676 = vmatpush1.msra.mxu0 %v113
      %677 = vmatprep.subr.mxu0 %v116
      %678 = vmatpush1.msra.mxu0 %v115
      %679 = vmatprep.subr.mxu0 %v118
      %680 = vmatpush1.msra.mxu0 %v117
      %681 = vmatprep.subr.mxu0 %v120
      %682 = vmatpush1.msra.mxu0 %v119
      %683 = vmatprep.subr.mxu0 %v122
      %684 = vmatpush1.msra.mxu0 %v121
      %685 = vmatprep.subr.mxu0 %v124
      %686 = vmatpush1.msra.mxu0 %v123
      %687 = vmatprep.subr.mxu0 0.0
      %688 = vmatpush1.msra.mxu0 0.0
      %689 = vmatprep.subr.mxu0 0.0
      %690 = vmatpush1.msra.mxu0 0.0
      %691 = vmatprep.subr.mxu0 0.0
      %692 = vmatpush1.msra.mxu0 0.0
      %693 = vmatprep.subr.mxu0 0.0
      %694 = vmatpush1.msra.mxu0 0.0
      %695 = vmatprep.subr.mxu0 0.0
      %696 = vmatpush1.msra.mxu0 0.0
      %697 = vmatprep.subr.mxu0 0.0
      %698 = vmatpush1.msra.mxu0 0.0
      %699 = vmatprep.subr.mxu0 0.0
      %700 = vmatpush1.msra.mxu0 0.0
      %701 = vmatprep.subr.mxu0 0.0
      %702 = vmatpush1.msra.mxu0 0.0
      %703 = vmatprep.subr.mxu0 0.0
      %704 = vmatpush1.msra.mxu0 0.0
      %705 = vmatprep.subr.mxu0 0.0
      %706 = vmatpush1.msra.mxu0 0.0
      %707 = vmatprep.subr.mxu0 0.0
      %708 = vmatpush1.msra.mxu0 0.0
      %709 = vmatprep.subr.mxu0 0.0
      %710 = vmatpush1.msra.mxu0 0.0
      %711 = vmatprep.subr.mxu0 0.0
      %712 = vmatpush1.msra.mxu0 0.0
      %713 = vmatprep.subr.mxu0 0.0
      %714 = vmatpush1.msra.mxu0 0.0
      %715 = vmatprep.subr.mxu0 0.0
      %716 = vmatpush1.msra.mxu0 0.0
      %717 = vmatprep.subr.mxu0 0.0
      %718 = vmatpush1.msra.mxu0 0.0
      %719 = vmatprep.mubr.f32.mxu0 0.0
      %720 = vmatmul.mubr.f32.gmra.mrb[0].mxu0 %v654
      %v721 = vpop.f32.mrb[0].mxu0
      %v722 = vadd.f32 %v126, %v721
      %v723 = vpop.f32.mrb[0].mxu0
      %v724 = vadd.f32 %v127, %v723
      %725 = vdwg.mxu0
      %v726 = vxor.u32 %v722, 2147483648
      %v727 = vmul.f32 %v726, 1.442695
      %v728 = vpow.pop %v727
      %v729 = vadd.f32 %v728, 1.0
      %v730 = vrcp.pop %v729
      %v731 = vmul.f32 1.0, %v730
      %733 = vrot.lane.b32.xlu0 %v724, 64
      %v734 = vpop.permute.xlu0 %733
      %v736 = vmul.f32 %v731, %v734
      %v737 = vadd.f32 %v724, %v736
      %v738 = vtanh.pop %v737
      %v739 = vsub.f32 1.0, %v731
      %741 = vrot.lane.b32.xlu0 %v738, 64
      %v742 = vpop.permute.xlu0 %741
      %v744 = vmul.f32 %v739, %v742
      %v745 = vmul.f32 %v731, %v540
      %v746 = vadd.f32 %v744, %v745
      %vm747 = vcmp.gt.s32.totalorder %v130, 2
      %749 = vrot.lane.b32.xlu0 %v746, 64
      %v750 = vpop.permute.xlu0 %749
      %v752 = vmax.f32 %v552, %v750
      %v753 = vsel %vm747, 1, 0
      %754 = vset.pattern.permute.xlu0 0
      %755 = vperm.xlu0 %754, %v753
      %v756 = vpop.permute.xlu0 %755
      %vm757 = vcmp.eq.s32.totalorder %v756, 1
      %v758 = vsel %vm757, %v752, %v552
      %v759 = vadd.f32 %v554, %v750
      %v760 = vsel %vm757, %v759, %v554
      %s761 = scalar_lea.vmem %s1, 48
      %v762 = vld [vmem:[%s761] sm:$0xff]
      %v763 = vld [vmem:[%s761 + $0x8] sm:$0xff]
      %v764 = vsel %vm137, %v652, 0
      %766 = vmatprep.subr.mxu0 %v78
      %767 = vmatpush1.msra.mxu0 %v77
      %768 = vmatprep.subr.mxu0 %v80
      %769 = vmatpush1.msra.mxu0 %v79
      %770 = vmatprep.subr.mxu0 %v82
      %771 = vmatpush1.msra.mxu0 %v81
      %772 = vmatprep.subr.mxu0 %v84
      %773 = vmatpush1.msra.mxu0 %v83
      %774 = vmatprep.subr.mxu0 %v86
      %775 = vmatpush1.msra.mxu0 %v85
      %776 = vmatprep.subr.mxu0 %v88
      %777 = vmatpush1.msra.mxu0 %v87
      %778 = vmatprep.subr.mxu0 %v90
      %779 = vmatpush1.msra.mxu0 %v89
      %780 = vmatprep.subr.mxu0 %v92
      %781 = vmatpush1.msra.mxu0 %v91
      %782 = vmatprep.subr.mxu0 0.0
      %783 = vmatpush1.msra.mxu0 0.0
      %784 = vmatprep.subr.mxu0 0.0
      %785 = vmatpush1.msra.mxu0 0.0
      %786 = vmatprep.subr.mxu0 0.0
      %787 = vmatpush1.msra.mxu0 0.0
      %788 = vmatprep.subr.mxu0 0.0
      %789 = vmatpush1.msra.mxu0 0.0
      %790 = vmatprep.subr.mxu0 0.0
      %791 = vmatpush1.msra.mxu0 0.0
      %792 = vmatprep.subr.mxu0 0.0
      %793 = vmatpush1.msra.mxu0 0.0
      %794 = vmatprep.subr.mxu0 0.0
      %795 = vmatpush1.msra.mxu0 0.0
      %796 = vmatprep.subr.mxu0 0.0
      %797 = vmatpush1.msra.mxu0 0.0
      %798 = vmatprep.subr.mxu0 0.0
      %799 = vmatpush1.msra.mxu0 0.0
      %800 = vmatprep.subr.mxu0 0.0
      %801 = vmatpush1.msra.mxu0 0.0
      %802 = vmatprep.subr.mxu0 0.0
      %803 = vmatpush1.msra.mxu0 0.0
      %804 = vmatprep.subr.mxu0 0.0
      %805 = vmatpush1.msra.mxu0 0.0
      %806 = vmatprep.subr.mxu0 0.0
      %807 = vmatpush1.msra.mxu0 0.0
      %808 = vmatprep.subr.mxu0 0.0
      %809 = vmatpush1.msra.mxu0 0.0
      %810 = vmatprep.subr.mxu0 0.0
      %811 = vmatpush1.msra.mxu0 0.0
      %812 = vmatprep.subr.mxu0 0.0
      %813 = vmatpush1.msra.mxu0 0.0
      %814 = vmatprep.subr.mxu0 0.0
      %815 = vmatpush1.msra.mxu0 0.0
      %816 = vmatprep.subr.mxu0 0.0
      %817 = vmatpush1.msra.mxu0 0.0
      %818 = vmatprep.subr.mxu0 0.0
      %819 = vmatpush1.msra.mxu0 0.0
      %820 = vmatprep.subr.mxu0 0.0
      %821 = vmatpush1.msra.mxu0 0.0
      %822 = vmatprep.subr.mxu0 0.0
      %823 = vmatpush1.msra.mxu0 0.0
      %824 = vmatprep.subr.mxu0 0.0
      %825 = vmatpush1.msra.mxu0 0.0
      %826 = vmatprep.subr.mxu0 0.0
      %827 = vmatpush1.msra.mxu0 0.0
      %828 = vmatprep.subr.mxu0 0.0
      %829 = vmatpush1.msra.mxu0 0.0
      %830 = vmatprep.mubr.f32.mxu0 0.0
      %831 = vmatmul.mubr.f32.gmra.mrb[0].mxu0 %v764
      %v832 = vpop.f32.mrb[0].mxu0
      %v833 = vadd.f32 0.0, %v832
      %v834 = vpop.f32.mrb[0].mxu0
      %v835 = vadd.f32 0.0, %v834
      %836 = vdwg.mxu0
      %v837 = vadd.f32 %v762, %v833
      %v838 = vxor.u32 %v837, 2147483648
      %v839 = vmul.f32 %v838, 1.442695
      %v840 = vpow.pop %v839
      %v841 = vadd.f32 %v840, 1.0
      %v842 = vrcp.pop %v841
      %v843 = vmul.f32 1.0, %v842
      %v844 = vadd.f32 %v835, %v125
      %v845 = vmul.f32 %v843, %v844
      %v846 = vadd.f32 %v763, %v845
      %v847 = vtanh.pop %v846
      %v848 = vsub.f32 1.0, %v843
      %850 = vrot.lane.b32.xlu0 %v847, 64
      %v851 = vpop.permute.xlu0 %850
      %v853 = vmul.f32 %v848, %v851
      %v854 = vmul.f32 %v843, %v649
      %v855 = vadd.f32 %v853, %v854
      %857 = vrot.lane.b32.xlu0 %v855, 64
      %v858 = vpop.permute.xlu0 %857
      %v860 = vsel %vm137, %v858, %v746
      %861 = vmatprep.subr.mxu0 %v94
      %862 = vmatpush1.msra.mxu0 %v93
      %863 = vmatprep.subr.mxu0 %v96
      %864 = vmatpush1.msra.mxu0 %v95
      %865 = vmatprep.subr.mxu0 %v98
      %866 = vmatpush1.msra.mxu0 %v97
      %867 = vmatprep.subr.mxu0 %v100
      %868 = vmatpush1.msra.mxu0 %v99
      %869 = vmatprep.subr.mxu0 %v102
      %870 = vmatpush1.msra.mxu0 %v101
      %871 = vmatprep.subr.mxu0 %v104
      %872 = vmatpush1.msra.mxu0 %v103
      %873 = vmatprep.subr.mxu0 %v106
      %874 = vmatpush1.msra.mxu0 %v105
      %875 = vmatprep.subr.mxu0 %v108
      %876 = vmatpush1.msra.mxu0 %v107
      %877 = vmatprep.subr.mxu0 %v110
      %878 = vmatpush1.msra.mxu0 %v109
      %879 = vmatprep.subr.mxu0 %v112
      %880 = vmatpush1.msra.mxu0 %v111
      %881 = vmatprep.subr.mxu0 %v114
      %882 = vmatpush1.msra.mxu0 %v113
      %883 = vmatprep.subr.mxu0 %v116
      %884 = vmatpush1.msra.mxu0 %v115
      %885 = vmatprep.subr.mxu0 %v118
      %886 = vmatpush1.msra.mxu0 %v117
      %887 = vmatprep.subr.mxu0 %v120
      %888 = vmatpush1.msra.mxu0 %v119
      %889 = vmatprep.subr.mxu0 %v122
      %890 = vmatpush1.msra.mxu0 %v121
      %891 = vmatprep.subr.mxu0 %v124
      %892 = vmatpush1.msra.mxu0 %v123
      %893 = vmatprep.subr.mxu0 0.0
      %894 = vmatpush1.msra.mxu0 0.0
      %895 = vmatprep.subr.mxu0 0.0
      %896 = vmatpush1.msra.mxu0 0.0
      %897 = vmatprep.subr.mxu0 0.0
      %898 = vmatpush1.msra.mxu0 0.0
      %899 = vmatprep.subr.mxu0 0.0
      %900 = vmatpush1.msra.mxu0 0.0
      %901 = vmatprep.subr.mxu0 0.0
      %902 = vmatpush1.msra.mxu0 0.0
      %903 = vmatprep.subr.mxu0 0.0
      %904 = vmatpush1.msra.mxu0 0.0
      %905 = vmatprep.subr.mxu0 0.0
      %906 = vmatpush1.msra.mxu0 0.0
      %907 = vmatprep.subr.mxu0 0.0
      %908 = vmatpush1.msra.mxu0 0.0
      %909 = vmatprep.subr.mxu0 0.0
      %910 = vmatpush1.msra.mxu0 0.0
      %911 = vmatprep.subr.mxu0 0.0
      %912 = vmatpush1.msra.mxu0 0.0
      %913 = vmatprep.subr.mxu0 0.0
      %914 = vmatpush1.msra.mxu0 0.0
      %915 = vmatprep.subr.mxu0 0.0
      %916 = vmatpush1.msra.mxu0 0.0
      %917 = vmatprep.subr.mxu0 0.0
      %918 = vmatpush1.msra.mxu0 0.0
      %919 = vmatprep.subr.mxu0 0.0
      %920 = vmatpush1.msra.mxu0 0.0
      %921 = vmatprep.subr.mxu0 0.0
      %922 = vmatpush1.msra.mxu0 0.0
      %923 = vmatprep.subr.mxu0 0.0
      %924 = vmatpush1.msra.mxu0 0.0
      %925 = vmatprep.mubr.f32.mxu0 0.0
      %926 = vmatmul.mubr.f32.gmra.mrb[0].mxu0 %v860
      %v927 = vpop.f32.mrb[0].mxu0
      %v928 = vadd.f32 %v126, %v927
      %v929 = vpop.f32.mrb[0].mxu0
      %v930 = vadd.f32 %v127, %v929
      %931 = vdwg.mxu0
      %v932 = vxor.u32 %v928, 2147483648
      %v933 = vmul.f32 %v932, 1.442695
      %v934 = vpow.pop %v933
      %v935 = vadd.f32 %v934, 1.0
      %v936 = vrcp.pop %v935
      %v937 = vmul.f32 1.0, %v936
      %939 = vrot.lane.b32.xlu0 %v930, 64
      %v940 = vpop.permute.xlu0 %939
      %v942 = vmul.f32 %v937, %v940
      %v943 = vadd.f32 %v930, %v942
      %v944 = vtanh.pop %v943
      %v945 = vsub.f32 1.0, %v937
      %947 = vrot.lane.b32.xlu0 %v944, 64
      %v948 = vpop.permute.xlu0 %947
      %v950 = vmul.f32 %v945, %v948
      %v951 = vmul.f32 %v937, %v746
      %v952 = vadd.f32 %v950, %v951
      %vm953 = vcmp.gt.s32.totalorder %v130, 3
      %955 = vrot.lane.b32.xlu0 %v952, 64
      %v956 = vpop.permute.xlu0 %955
      %v958 = vmax.f32 %v758, %v956
      %v959 = vsel %vm953, 1, 0
      %960 = vset.pattern.permute.xlu0 0
      %961 = vperm.xlu0 %960, %v959
      %v962 = vpop.permute.xlu0 %961
      %vm963 = vcmp.eq.s32.totalorder %v962, 1
      %v964 = vsel %vm963, %v958, %v758
      %v965 = vadd.f32 %v760, %v956
      %v966 = vsel %vm963, %v965, %v760
      %s967 = scalar_lea.vmem %s1, 64
      %v968 = vld [vmem:[%s967] sm:$0xff]
      %v969 = vld [vmem:[%s967 + $0x8] sm:$0xff]
      %v970 = vsel %vm137, %v858, 0
      %972 = vmatprep.subr.mxu0 %v78
      %973 = vmatpush1.msra.mxu0 %v77
      %974 = vmatprep.subr.mxu0 %v80
      %975 = vmatpush1.msra.mxu0 %v79
      %976 = vmatprep.subr.mxu0 %v82
      %977 = vmatpush1.msra.mxu0 %v81
      %978 = vmatprep.subr.mxu0 %v84
      %979 = vmatpush1.msra.mxu0 %v83
      %980 = vmatprep.subr.mxu0 %v86
      %981 = vmatpush1.msra.mxu0 %v85
      %982 = vmatprep.subr.mxu0 %v88
      %983 = vmatpush1.msra.mxu0 %v87
      %984 = vmatprep.subr.mxu0 %v90
      %985 = vmatpush1.msra.mxu0 %v89
      %986 = vmatprep.subr.mxu0 %v92
      %987 = vmatpush1.msra.mxu0 %v91
      %988 = vmatprep.subr.mxu0 0.0
      %989 = vmatpush1.msra.mxu0 0.0
      %990 = vmatprep.subr.mxu0 0.0
      %991 = vmatpush1.msra.mxu0 0.0
      %992 = vmatprep.subr.mxu0 0.0
      %993 = vmatpush1.msra.mxu0 0.0
      %994 = vmatprep.subr.mxu0 0.0
      %995 = vmatpush1.msra.mxu0 0.0
      %996 = vmatprep.subr.mxu0 0.0
      %997 = vmatpush1.msra.mxu0 0.0
      %998 = vmatprep.subr.mxu0 0.0
      %999 = vmatpush1.msra.mxu0 0.0
      %1000 = vmatprep.subr.mxu0 0.0
      %1001 = vmatpush1.msra.mxu0 0.0
      %1002 = vmatprep.subr.mxu0 0.0
      %1003 = vmatpush1.msra.mxu0 0.0
      %1004 = vmatprep.subr.mxu0 0.0
      %1005 = vmatpush1.msra.mxu0 0.0
      %1006 = vmatprep.subr.mxu0 0.0
      %1007 = vmatpush1.msra.mxu0 0.0
      %1008 = vmatprep.subr.mxu0 0.0
      %1009 = vmatpush1.msra.mxu0 0.0
      %1010 = vmatprep.subr.mxu0 0.0
      %1011 = vmatpush1.msra.mxu0 0.0
      %1012 = vmatprep.subr.mxu0 0.0
      %1013 = vmatpush1.msra.mxu0 0.0
      %1014 = vmatprep.subr.mxu0 0.0
      %1015 = vmatpush1.msra.mxu0 0.0
      %1016 = vmatprep.subr.mxu0 0.0
      %1017 = vmatpush1.msra.mxu0 0.0
      %1018 = vmatprep.subr.mxu0 0.0
      %1019 = vmatpush1.msra.mxu0 0.0
      %1020 = vmatprep.subr.mxu0 0.0
      %1021 = vmatpush1.msra.mxu0 0.0
      %1022 = vmatprep.subr.mxu0 0.0
      %1023 = vmatpush1.msra.mxu0 0.0
      %1024 = vmatprep.subr.mxu0 0.0
      %1025 = vmatpush1.msra.mxu0 0.0
      %1026 = vmatprep.subr.mxu0 0.0
      %1027 = vmatpush1.msra.mxu0 0.0
      %1028 = vmatprep.subr.mxu0 0.0
      %1029 = vmatpush1.msra.mxu0 0.0
      %1030 = vmatprep.subr.mxu0 0.0
      %1031 = vmatpush1.msra.mxu0 0.0
      %1032 = vmatprep.subr.mxu0 0.0
      %1033 = vmatpush1.msra.mxu0 0.0
      %1034 = vmatprep.subr.mxu0 0.0
      %1035 = vmatpush1.msra.mxu0 0.0
      %1036 = vmatprep.mubr.f32.mxu0 0.0
      %1037 = vmatmul.mubr.f32.gmra.mrb[0].mxu0 %v970
      %v1038 = vpop.f32.mrb[0].mxu0
      %v1039 = vadd.f32 0.0, %v1038
      %v1040 = vpop.f32.mrb[0].mxu0
      %v1041 = vadd.f32 0.0, %v1040
      %1042 = vdwg.mxu0
      %v1043 = vadd.f32 %v968, %v1039
      %v1044 = vxor.u32 %v1043, 2147483648
      %v1045 = vmul.f32 %v1044, 1.442695
      %v1046 = vpow.pop %v1045
      %v1047 = vadd.f32 %v1046, 1.0
      %v1048 = vrcp.pop %v1047
      %v1049 = vmul.f32 1.0, %v1048
      %v1050 = vadd.f32 %v1041, %v125
      %v1051 = vmul.f32 %v1049, %v1050
      %v1052 = vadd.f32 %v969, %v1051
      %v1053 = vtanh.pop %v1052
      %v1054 = vsub.f32 1.0, %v1049
      %1056 = vrot.lane.b32.xlu0 %v1053, 64
      %v1057 = vpop.permute.xlu0 %1056
      %v1059 = vmul.f32 %v1054, %v1057
      %v1060 = vmul.f32 %v1049, %v855
      %v1061 = vadd.f32 %v1059, %v1060
      %1063 = vrot.lane.b32.xlu0 %v1061, 64
      %v1064 = vpop.permute.xlu0 %1063
      %v1066 = vsel %vm137, %v1064, %v952
      %1067 = vmatprep.subr.mxu0 %v94
      %1068 = vmatpush1.msra.mxu0 %v93
      %1069 = vmatprep.subr.mxu0 %v96
      %1070 = vmatpush1.msra.mxu0 %v95
      %1071 = vmatprep.subr.mxu0 %v98
      %1072 = vmatpush1.msra.mxu0 %v97
      %1073 = vmatprep.subr.mxu0 %v100
      %1074 = vmatpush1.msra.mxu0 %v99
      %1075 = vmatprep.subr.mxu0 %v102
      %1076 = vmatpush1.msra.mxu0 %v101
      %1077 = vmatprep.subr.mxu0 %v104
      %1078 = vmatpush1.msra.mxu0 %v103
      %1079 = vmatprep.subr.mxu0 %v106
      %1080 = vmatpush1.msra.mxu0 %v105
      %1081 = vmatprep.subr.mxu0 %v108
      %1082 = vmatpush1.msra.mxu0 %v107
      %1083 = vmatprep.subr.mxu0 %v110
      %1084 = vmatpush1.msra.mxu0 %v109
      %1085 = vmatprep.subr.mxu0 %v112
      %1086 = vmatpush1.msra.mxu0 %v111
      %1087 = vmatprep.subr.mxu0 %v114
      %1088 = vmatpush1.msra.mxu0 %v113
      %1089 = vmatprep.subr.mxu0 %v116
      %1090 = vmatpush1.msra.mxu0 %v115
      %1091 = vmatprep.subr.mxu0 %v118
      %1092 = vmatpush1.msra.mxu0 %v117
      %1093 = vmatprep.subr.mxu0 %v120
      %1094 = vmatpush1.msra.mxu0 %v119
      %1095 = vmatprep.subr.mxu0 %v122
      %1096 = vmatpush1.msra.mxu0 %v121
      %1097 = vmatprep.subr.mxu0 %v124
      %1098 = vmatpush1.msra.mxu0 %v123
      %1099 = vmatprep.subr.mxu0 0.0
      %1100 = vmatpush1.msra.mxu0 0.0
      %1101 = vmatprep.subr.mxu0 0.0
      %1102 = vmatpush1.msra.mxu0 0.0
      %1103 = vmatprep.subr.mxu0 0.0
      %1104 = vmatpush1.msra.mxu0 0.0
      %1105 = vmatprep.subr.mxu0 0.0
      %1106 = vmatpush1.msra.mxu0 0.0
      %1107 = vmatprep.subr.mxu0 0.0
      %1108 = vmatpush1.msra.mxu0 0.0
      %1109 = vmatprep.subr.mxu0 0.0
      %1110 = vmatpush1.msra.mxu0 0.0
      %1111 = vmatprep.subr.mxu0 0.0
      %1112 = vmatpush1.msra.mxu0 0.0
      %1113 = vmatprep.subr.mxu0 0.0
      %1114 = vmatpush1.msra.mxu0 0.0
      %1115 = vmatprep.subr.mxu0 0.0
      %1116 = vmatpush1.msra.mxu0 0.0
      %1117 = vmatprep.subr.mxu0 0.0
      %1118 = vmatpush1.msra.mxu0 0.0
      %1119 = vmatprep.subr.mxu0 0.0
      %1120 = vmatpush1.msra.mxu0 0.0
      %1121 = vmatprep.subr.mxu0 0.0
      %1122 = vmatpush1.msra.mxu0 0.0
      %1123 = vmatprep.subr.mxu0 0.0
      %1124 = vmatpush1.msra.mxu0 0.0
      %1125 = vmatprep.subr.mxu0 0.0
      %1126 = vmatpush1.msra.mxu0 0.0
      %1127 = vmatprep.subr.mxu0 0.0
      %1128 = vmatpush1.msra.mxu0 0.0
      %1129 = vmatprep.subr.mxu0 0.0
      %1130 = vmatpush1.msra.mxu0 0.0
      %1131 = vmatprep.mubr.f32.mxu0 0.0
      %1132 = vmatmul.mubr.f32.gmra.mrb[0].mxu0 %v1066
      %v1133 = vpop.f32.mrb[0].mxu0
      %v1134 = vadd.f32 %v126, %v1133
      %v1135 = vpop.f32.mrb[0].mxu0
      %v1136 = vadd.f32 %v127, %v1135
      %1137 = vdwg.mxu0
      %v1138 = vxor.u32 %v1134, 2147483648
      %v1139 = vmul.f32 %v1138, 1.442695
      %v1140 = vpow.pop %v1139
      %v1141 = vadd.f32 %v1140, 1.0
      %v1142 = vrcp.pop %v1141
      %v1143 = vmul.f32 1.0, %v1142
      %1145 = vrot.lane.b32.xlu0 %v1136, 64
      %v1146 = vpop.permute.xlu0 %1145
      %v1148 = vmul.f32 %v1143, %v1146
      %v1149 = vadd.f32 %v1136, %v1148
      %v1150 = vtanh.pop %v1149
      %v1151 = vsub.f32 1.0, %v1143
      %1153 = vrot.lane.b32.xlu0 %v1150, 64
      %v1154 = vpop.permute.xlu0 %1153
      %v1156 = vmul.f32 %v1151, %v1154
      %v1157 = vmul.f32 %v1143, %v952
      %v1158 = vadd.f32 %v1156, %v1157
      %vm1159 = vcmp.gt.s32.totalorder %v130, 4
      %1161 = vrot.lane.b32.xlu0 %v1158, 64
      %v1162 = vpop.permute.xlu0 %1161
      %v1164 = vmax.f32 %v964, %v1162
      %v1165 = vsel %vm1159, 1, 0
      %1166 = vset.pattern.permute.xlu0 0
      %1167 = vperm.xlu0 %1166, %v1165
      %v1168 = vpop.permute.xlu0 %1167
      %vm1169 = vcmp.eq.s32.totalorder %v1168, 1
      %v1170 = vsel %vm1169, %v1164, %v964
      %v1171 = vadd.f32 %v966, %v1162
      %v1172 = vsel %vm1169, %v1171, %v966
      %s1173 = scalar_lea.vmem %s1, 80
      %v1174 = vld [vmem:[%s1173] sm:$0xff]
      %v1175 = vld [vmem:[%s1173 + $0x8] sm:$0xff]
      %v1176 = vsel %vm137, %v1064, 0
      %1178 = vmatprep.subr.mxu0 %v78
      %1179 = vmatpush1.msra.mxu0 %v77
      %1180 = vmatprep.subr.mxu0 %v80
      %1181 = vmatpush1.msra.mxu0 %v79
      %1182 = vmatprep.subr.mxu0 %v82
      %1183 = vmatpush1.msra.mxu0 %v81
      %1184 = vmatprep.subr.mxu0 %v84
      %1185 = vmatpush1.msra.mxu0 %v83
      %1186 = vmatprep.subr.mxu0 %v86
      %1187 = vmatpush1.msra.mxu0 %v85
      %1188 = vmatprep.subr.mxu0 %v88
      %1189 = vmatpush1.msra.mxu0 %v87
      %1190 = vmatprep.subr.mxu0 %v90
      %1191 = vmatpush1.msra.mxu0 %v89
      %1192 = vmatprep.subr.mxu0 %v92
      %1193 = vmatpush1.msra.mxu0 %v91
      %1194 = vmatprep.subr.mxu0 0.0
      %1195 = vmatpush1.msra.mxu0 0.0
      %1196 = vmatprep.subr.mxu0 0.0
      %1197 = vmatpush1.msra.mxu0 0.0
      %1198 = vmatprep.subr.mxu0 0.0
      %1199 = vmatpush1.msra.mxu0 0.0
      %1200 = vmatprep.subr.mxu0 0.0
      %1201 = vmatpush1.msra.mxu0 0.0
      %1202 = vmatprep.subr.mxu0 0.0
      %1203 = vmatpush1.msra.mxu0 0.0
      %1204 = vmatprep.subr.mxu0 0.0
      %1205 = vmatpush1.msra.mxu0 0.0
      %1206 = vmatprep.subr.mxu0 0.0
      %1207 = vmatpush1.msra.mxu0 0.0
      %1208 = vmatprep.subr.mxu0 0.0
      %1209 = vmatpush1.msra.mxu0 0.0
      %1210 = vmatprep.subr.mxu0 0.0
      %1211 = vmatpush1.msra.mxu0 0.0
      %1212 = vmatprep.subr.mxu0 0.0
      %1213 = vmatpush1.msra.mxu0 0.0
      %1214 = vmatprep.subr.mxu0 0.0
      %1215 = vmatpush1.msra.mxu0 0.0
      %1216 = vmatprep.subr.mxu0 0.0
      %1217 = vmatpush1.msra.mxu0 0.0
      %1218 = vmatprep.subr.mxu0 0.0
      %1219 = vmatpush1.msra.mxu0 0.0
      %1220 = vmatprep.subr.mxu0 0.0
      %1221 = vmatpush1.msra.mxu0 0.0
      %1222 = vmatprep.subr.mxu0 0.0
      %1223 = vmatpush1.msra.mxu0 0.0
      %1224 = vmatprep.subr.mxu0 0.0
      %1225 = vmatpush1.msra.mxu0 0.0
      %1226 = vmatprep.subr.mxu0 0.0
      %1227 = vmatpush1.msra.mxu0 0.0
      %1228 = vmatprep.subr.mxu0 0.0
      %1229 = vmatpush1.msra.mxu0 0.0
      %1230 = vmatprep.subr.mxu0 0.0
      %1231 = vmatpush1.msra.mxu0 0.0
      %1232 = vmatprep.subr.mxu0 0.0
      %1233 = vmatpush1.msra.mxu0 0.0
      %1234 = vmatprep.subr.mxu0 0.0
      %1235 = vmatpush1.msra.mxu0 0.0
      %1236 = vmatprep.subr.mxu0 0.0
      %1237 = vmatpush1.msra.mxu0 0.0
      %1238 = vmatprep.subr.mxu0 0.0
      %1239 = vmatpush1.msra.mxu0 0.0
      %1240 = vmatprep.subr.mxu0 0.0
      %1241 = vmatpush1.msra.mxu0 0.0
      %1242 = vmatprep.mubr.f32.mxu0 0.0
      %1243 = vmatmul.mubr.f32.gmra.mrb[0].mxu0 %v1176
      %v1244 = vpop.f32.mrb[0].mxu0
      %v1245 = vadd.f32 0.0, %v1244
      %v1246 = vpop.f32.mrb[0].mxu0
      %v1247 = vadd.f32 0.0, %v1246
      %1248 = vdwg.mxu0
      %v1249 = vadd.f32 %v1174, %v1245
      %v1250 = vxor.u32 %v1249, 2147483648
      %v1251 = vmul.f32 %v1250, 1.442695
      %v1252 = vpow.pop %v1251
      %v1253 = vadd.f32 %v1252, 1.0
      %v1254 = vrcp.pop %v1253
      %v1255 = vmul.f32 1.0, %v1254
      %v1256 = vadd.f32 %v1247, %v125
      %v1257 = vmul.f32 %v1255, %v1256
      %v1258 = vadd.f32 %v1175, %v1257
      %v1259 = vtanh.pop %v1258
      %v1260 = vsub.f32 1.0, %v1255
      %1262 = vrot.lane.b32.xlu0 %v1259, 64
      %v1263 = vpop.permute.xlu0 %1262
      %v1265 = vmul.f32 %v1260, %v1263
      %v1266 = vmul.f32 %v1255, %v1061
      %v1267 = vadd.f32 %v1265, %v1266
      %1269 = vrot.lane.b32.xlu0 %v1267, 64
      %v1270 = vpop.permute.xlu0 %1269
      %v1272 = vsel %vm137, %v1270, %v1158
      %1273 = vmatprep.subr.mxu0 %v94
      %1274 = vmatpush1.msra.mxu0 %v93
      %1275 = vmatprep.subr.mxu0 %v96
      %1276 = vmatpush1.msra.mxu0 %v95
      %1277 = vmatprep.subr.mxu0 %v98
      %1278 = vmatpush1.msra.mxu0 %v97
      %1279 = vmatprep.subr.mxu0 %v100
      %1280 = vmatpush1.msra.mxu0 %v99
      %1281 = vmatprep.subr.mxu0 %v102
      %1282 = vmatpush1.msra.mxu0 %v101
      %1283 = vmatprep.subr.mxu0 %v104
      %1284 = vmatpush1.msra.mxu0 %v103
      %1285 = vmatprep.subr.mxu0 %v106
      %1286 = vmatpush1.msra.mxu0 %v105
      %1287 = vmatprep.subr.mxu0 %v108
      %1288 = vmatpush1.msra.mxu0 %v107
      %1289 = vmatprep.subr.mxu0 %v110
      %1290 = vmatpush1.msra.mxu0 %v109
      %1291 = vmatprep.subr.mxu0 %v112
      %1292 = vmatpush1.msra.mxu0 %v111
      %1293 = vmatprep.subr.mxu0 %v114
      %1294 = vmatpush1.msra.mxu0 %v113
      %1295 = vmatprep.subr.mxu0 %v116
      %1296 = vmatpush1.msra.mxu0 %v115
      %1297 = vmatprep.subr.mxu0 %v118
      %1298 = vmatpush1.msra.mxu0 %v117
      %1299 = vmatprep.subr.mxu0 %v120
      %1300 = vmatpush1.msra.mxu0 %v119
      %1301 = vmatprep.subr.mxu0 %v122
      %1302 = vmatpush1.msra.mxu0 %v121
      %1303 = vmatprep.subr.mxu0 %v124
      %1304 = vmatpush1.msra.mxu0 %v123
      %1305 = vmatprep.subr.mxu0 0.0
      %1306 = vmatpush1.msra.mxu0 0.0
      %1307 = vmatprep.subr.mxu0 0.0
      %1308 = vmatpush1.msra.mxu0 0.0
      %1309 = vmatprep.subr.mxu0 0.0
      %1310 = vmatpush1.msra.mxu0 0.0
      %1311 = vmatprep.subr.mxu0 0.0
      %1312 = vmatpush1.msra.mxu0 0.0
      %1313 = vmatprep.subr.mxu0 0.0
      %1314 = vmatpush1.msra.mxu0 0.0
      %1315 = vmatprep.subr.mxu0 0.0
      %1316 = vmatpush1.msra.mxu0 0.0
      %1317 = vmatprep.subr.mxu0 0.0
      %1318 = vmatpush1.msra.mxu0 0.0
      %1319 = vmatprep.subr.mxu0 0.0
      %1320 = vmatpush1.msra.mxu0 0.0
      %1321 = vmatprep.subr.mxu0 0.0
      %1322 = vmatpush1.msra.mxu0 0.0
      %1323 = vmatprep.subr.mxu0 0.0
      %1324 = vmatpush1.msra.mxu0 0.0
      %1325 = vmatprep.subr.mxu0 0.0
      %1326 = vmatpush1.msra.mxu0 0.0
      %1327 = vmatprep.subr.mxu0 0.0
      %1328 = vmatpush1.msra.mxu0 0.0
      %1329 = vmatprep.subr.mxu0 0.0
      %1330 = vmatpush1.msra.mxu0 0.0
      %1331 = vmatprep.subr.mxu0 0.0
      %1332 = vmatpush1.msra.mxu0 0.0
      %1333 = vmatprep.subr.mxu0 0.0
      %1334 = vmatpush1.msra.mxu0 0.0
      %1335 = vmatprep.subr.mxu0 0.0
      %1336 = vmatpush1.msra.mxu0 0.0
      %1337 = vmatprep.mubr.f32.mxu0 0.0
      %1338 = vmatmul.mubr.f32.gmra.mrb[0].mxu0 %v1272
      %v1339 = vpop.f32.mrb[0].mxu0
      %v1340 = vadd.f32 %v126, %v1339
      %v1341 = vpop.f32.mrb[0].mxu0
      %v1342 = vadd.f32 %v127, %v1341
      %1343 = vdwg.mxu0
      %v1344 = vxor.u32 %v1340, 2147483648
      %v1345 = vmul.f32 %v1344, 1.442695
      %v1346 = vpow.pop %v1345
      %v1347 = vadd.f32 %v1346, 1.0
      %v1348 = vrcp.pop %v1347
      %v1349 = vmul.f32 1.0, %v1348
      %1351 = vrot.lane.b32.xlu0 %v1342, 64
      %v1352 = vpop.permute.xlu0 %1351
      %v1354 = vmul.f32 %v1349, %v1352
      %v1355 = vadd.f32 %v1342, %v1354
      %v1356 = vtanh.pop %v1355
      %v1357 = vsub.f32 1.0, %v1349
      %1359 = vrot.lane.b32.xlu0 %v1356, 64
      %v1360 = vpop.permute.xlu0 %1359
      %v1362 = vmul.f32 %v1357, %v1360
      %v1363 = vmul.f32 %v1349, %v1158
      %v1364 = vadd.f32 %v1362, %v1363
      %vm1365 = vcmp.gt.s32.totalorder %v130, 5
      %1367 = vrot.lane.b32.xlu0 %v1364, 64
      %v1368 = vpop.permute.xlu0 %1367
      %v1370 = vmax.f32 %v1170, %v1368
      %v1371 = vsel %vm1365, 1, 0
      %1372 = vset.pattern.permute.xlu0 0
      %1373 = vperm.xlu0 %1372, %v1371
      %v1374 = vpop.permute.xlu0 %1373
      %vm1375 = vcmp.eq.s32.totalorder %v1374, 1
      %v1376 = vsel %vm1375, %v1370, %v1170
      %v1377 = vadd.f32 %v1172, %v1368
      %v1378 = vsel %vm1375, %v1377, %v1172
      %s1379 = scalar_lea.vmem %s1, 96
      %v1380 = vld [vmem:[%s1379] sm:$0xff]
      %v1381 = vld [vmem:[%s1379 + $0x8] sm:$0xff]
      %v1382 = vsel %vm137, %v1270, 0
      %1384 = vmatprep.subr.mxu0 %v78
      %1385 = vmatpush1.msra.mxu0 %v77
      %1386 = vmatprep.subr.mxu0 %v80
      %1387 = vmatpush1.msra.mxu0 %v79
      %1388 = vmatprep.subr.mxu0 %v82
      %1389 = vmatpush1.msra.mxu0 %v81
      %1390 = vmatprep.subr.mxu0 %v84
      %1391 = vmatpush1.msra.mxu0 %v83
      %1392 = vmatprep.subr.mxu0 %v86
      %1393 = vmatpush1.msra.mxu0 %v85
      %1394 = vmatprep.subr.mxu0 %v88
      %1395 = vmatpush1.msra.mxu0 %v87
      %1396 = vmatprep.subr.mxu0 %v90
      %1397 = vmatpush1.msra.mxu0 %v89
      %1398 = vmatprep.subr.mxu0 %v92
      %1399 = vmatpush1.msra.mxu0 %v91
      %1400 = vmatprep.subr.mxu0 0.0
      %1401 = vmatpush1.msra.mxu0 0.0
      %1402 = vmatprep.subr.mxu0 0.0
      %1403 = vmatpush1.msra.mxu0 0.0
      %1404 = vmatprep.subr.mxu0 0.0
      %1405 = vmatpush1.msra.mxu0 0.0
      %1406 = vmatprep.subr.mxu0 0.0
      %1407 = vmatpush1.msra.mxu0 0.0
      %1408 = vmatprep.subr.mxu0 0.0
      %1409 = vmatpush1.msra.mxu0 0.0
      %1410 = vmatprep.subr.mxu0 0.0
      %1411 = vmatpush1.msra.mxu0 0.0
      %1412 = vmatprep.subr.mxu0 0.0
      %1413 = vmatpush1.msra.mxu0 0.0
      %1414 = vmatprep.subr.mxu0 0.0
      %1415 = vmatpush1.msra.mxu0 0.0
      %1416 = vmatprep.subr.mxu0 0.0
      %1417 = vmatpush1.msra.mxu0 0.0
      %1418 = vmatprep.subr.mxu0 0.0
      %1419 = vmatpush1.msra.mxu0 0.0
      %1420 = vmatprep.subr.mxu0 0.0
      %1421 = vmatpush1.msra.mxu0 0.0
      %1422 = vmatprep.subr.mxu0 0.0
      %1423 = vmatpush1.msra.mxu0 0.0
      %1424 = vmatprep.subr.mxu0 0.0
      %1425 = vmatpush1.msra.mxu0 0.0
      %1426 = vmatprep.subr.mxu0 0.0
      %1427 = vmatpush1.msra.mxu0 0.0
      %1428 = vmatprep.subr.mxu0 0.0
      %1429 = vmatpush1.msra.mxu0 0.0
      %1430 = vmatprep.subr.mxu0 0.0
      %1431 = vmatpush1.msra.mxu0 0.0
      %1432 = vmatprep.subr.mxu0 0.0
      %1433 = vmatpush1.msra.mxu0 0.0
      %1434 = vmatprep.subr.mxu0 0.0
      %1435 = vmatpush1.msra.mxu0 0.0
      %1436 = vmatprep.subr.mxu0 0.0
      %1437 = vmatpush1.msra.mxu0 0.0
      %1438 = vmatprep.subr.mxu0 0.0
      %1439 = vmatpush1.msra.mxu0 0.0
      %1440 = vmatprep.subr.mxu0 0.0
      %1441 = vmatpush1.msra.mxu0 0.0
      %1442 = vmatprep.subr.mxu0 0.0
      %1443 = vmatpush1.msra.mxu0 0.0
      %1444 = vmatprep.subr.mxu0 0.0
      %1445 = vmatpush1.msra.mxu0 0.0
      %1446 = vmatprep.subr.mxu0 0.0
      %1447 = vmatpush1.msra.mxu0 0.0
      %1448 = vmatprep.mubr.f32.mxu0 0.0
      %1449 = vmatmul.mubr.f32.gmra.mrb[0].mxu0 %v1382
      %v1450 = vpop.f32.mrb[0].mxu0
      %v1451 = vadd.f32 0.0, %v1450
      %v1452 = vpop.f32.mrb[0].mxu0
      %v1453 = vadd.f32 0.0, %v1452
      %1454 = vdwg.mxu0
      %v1455 = vadd.f32 %v1380, %v1451
      %v1456 = vxor.u32 %v1455, 2147483648
      %v1457 = vmul.f32 %v1456, 1.442695
      %v1458 = vpow.pop %v1457
      %v1459 = vadd.f32 %v1458, 1.0
      %v1460 = vrcp.pop %v1459
      %v1461 = vmul.f32 1.0, %v1460
      %v1462 = vadd.f32 %v1453, %v125
      %v1463 = vmul.f32 %v1461, %v1462
      %v1464 = vadd.f32 %v1381, %v1463
      %v1465 = vtanh.pop %v1464
      %v1466 = vsub.f32 1.0, %v1461
      %1468 = vrot.lane.b32.xlu0 %v1465, 64
      %v1469 = vpop.permute.xlu0 %1468
      %v1471 = vmul.f32 %v1466, %v1469
      %v1472 = vmul.f32 %v1461, %v1267
      %v1473 = vadd.f32 %v1471, %v1472
      %1475 = vrot.lane.b32.xlu0 %v1473, 64
      %v1476 = vpop.permute.xlu0 %1475
      %v1478 = vsel %vm137, %v1476, %v1364
      %1479 = vmatprep.subr.mxu0 %v94
      %1480 = vmatpush1.msra.mxu0 %v93
      %1481 = vmatprep.subr.mxu0 %v96
      %1482 = vmatpush1.msra.mxu0 %v95
      %1483 = vmatprep.subr.mxu0 %v98
      %1484 = vmatpush1.msra.mxu0 %v97
      %1485 = vmatprep.subr.mxu0 %v100
      %1486 = vmatpush1.msra.mxu0 %v99
      %1487 = vmatprep.subr.mxu0 %v102
      %1488 = vmatpush1.msra.mxu0 %v101
      %1489 = vmatprep.subr.mxu0 %v104
      %1490 = vmatpush1.msra.mxu0 %v103
      %1491 = vmatprep.subr.mxu0 %v106
      %1492 = vmatpush1.msra.mxu0 %v105
      %1493 = vmatprep.subr.mxu0 %v108
      %1494 = vmatpush1.msra.mxu0 %v107
      %1495 = vmatprep.subr.mxu0 %v110
      %1496 = vmatpush1.msra.mxu0 %v109
      %1497 = vmatprep.subr.mxu0 %v112
      %1498 = vmatpush1.msra.mxu0 %v111
      %1499 = vmatprep.subr.mxu0 %v114
      %1500 = vmatpush1.msra.mxu0 %v113
      %1501 = vmatprep.subr.mxu0 %v116
      %1502 = vmatpush1.msra.mxu0 %v115
      %1503 = vmatprep.subr.mxu0 %v118
      %1504 = vmatpush1.msra.mxu0 %v117
      %1505 = vmatprep.subr.mxu0 %v120
      %1506 = vmatpush1.msra.mxu0 %v119
      %1507 = vmatprep.subr.mxu0 %v122
      %1508 = vmatpush1.msra.mxu0 %v121
      %1509 = vmatprep.subr.mxu0 %v124
      %1510 = vmatpush1.msra.mxu0 %v123
      %1511 = vmatprep.subr.mxu0 0.0
      %1512 = vmatpush1.msra.mxu0 0.0
      %1513 = vmatprep.subr.mxu0 0.0
      %1514 = vmatpush1.msra.mxu0 0.0
      %1515 = vmatprep.subr.mxu0 0.0
      %1516 = vmatpush1.msra.mxu0 0.0
      %1517 = vmatprep.subr.mxu0 0.0
      %1518 = vmatpush1.msra.mxu0 0.0
      %1519 = vmatprep.subr.mxu0 0.0
      %1520 = vmatpush1.msra.mxu0 0.0
      %1521 = vmatprep.subr.mxu0 0.0
      %1522 = vmatpush1.msra.mxu0 0.0
      %1523 = vmatprep.subr.mxu0 0.0
      %1524 = vmatpush1.msra.mxu0 0.0
      %1525 = vmatprep.subr.mxu0 0.0
      %1526 = vmatpush1.msra.mxu0 0.0
      %1527 = vmatprep.subr.mxu0 0.0
      %1528 = vmatpush1.msra.mxu0 0.0
      %1529 = vmatprep.subr.mxu0 0.0
      %1530 = vmatpush1.msra.mxu0 0.0
      %1531 = vmatprep.subr.mxu0 0.0
      %1532 = vmatpush1.msra.mxu0 0.0
      %1533 = vmatprep.subr.mxu0 0.0
      %1534 = vmatpush1.msra.mxu0 0.0
      %1535 = vmatprep.subr.mxu0 0.0
      %1536 = vmatpush1.msra.mxu0 0.0
      %1537 = vmatprep.subr.mxu0 0.0
      %1538 = vmatpush1.msra.mxu0 0.0
      %1539 = vmatprep.subr.mxu0 0.0
      %1540 = vmatpush1.msra.mxu0 0.0
      %1541 = vmatprep.subr.mxu0 0.0
      %1542 = vmatpush1.msra.mxu0 0.0
      %1543 = vmatprep.mubr.f32.mxu0 0.0
      %1544 = vmatmul.mubr.f32.gmra.mrb[0].mxu0 %v1478
      %v1545 = vpop.f32.mrb[0].mxu0
      %v1546 = vadd.f32 %v126, %v1545
      %v1547 = vpop.f32.mrb[0].mxu0
      %v1548 = vadd.f32 %v127, %v1547
      %1549 = vdwg.mxu0
      %v1550 = vxor.u32 %v1546, 2147483648
      %v1551 = vmul.f32 %v1550, 1.442695
      %v1552 = vpow.pop %v1551
      %v1553 = vadd.f32 %v1552, 1.0
      %v1554 = vrcp.pop %v1553
      %v1555 = vmul.f32 1.0, %v1554
      %1557 = vrot.lane.b32.xlu0 %v1548, 64
      %v1558 = vpop.permute.xlu0 %1557
      %v1560 = vmul.f32 %v1555, %v1558
      %v1561 = vadd.f32 %v1548, %v1560
      %v1562 = vtanh.pop %v1561
      %v1563 = vsub.f32 1.0, %v1555
      %1565 = vrot.lane.b32.xlu0 %v1562, 64
      %v1566 = vpop.permute.xlu0 %1565
      %v1568 = vmul.f32 %v1563, %v1566
      %v1569 = vmul.f32 %v1555, %v1364
      %v1570 = vadd.f32 %v1568, %v1569
      %vm1571 = vcmp.gt.s32.totalorder %v130, 6
      %1573 = vrot.lane.b32.xlu0 %v1570, 64
      %v1574 = vpop.permute.xlu0 %1573
      %v1576 = vmax.f32 %v1376, %v1574
      %v1577 = vsel %vm1571, 1, 0
      %1578 = vset.pattern.permute.xlu0 0
      %1579 = vperm.xlu0 %1578, %v1577
      %v1580 = vpop.permute.xlu0 %1579
      %vm1581 = vcmp.eq.s32.totalorder %v1580, 1
      %v1582 = vsel %vm1581, %v1576, %v1376
      %v1583 = vadd.f32 %v1378, %v1574
      %v1584 = vsel %vm1581, %v1583, %v1378
      %s1585 = scalar_lea.vmem %s1, 112
      %v1586 = vld [vmem:[%s1585] sm:$0xff]
      %v1587 = vld [vmem:[%s1585 + $0x8] sm:$0xff]
      %v1588 = vsel %vm137, %v1476, 0
      %1590 = vmatprep.subr.mxu0 %v78
      %1591 = vmatpush1.msra.mxu0 %v77
      %1592 = vmatprep.subr.mxu0 %v80
      %1593 = vmatpush1.msra.mxu0 %v79
      %1594 = vmatprep.subr.mxu0 %v82
      %1595 = vmatpush1.msra.mxu0 %v81
      %1596 = vmatprep.subr.mxu0 %v84
      %1597 = vmatpush1.msra.mxu0 %v83
      %1598 = vmatprep.subr.mxu0 %v86
      %1599 = vmatpush1.msra.mxu0 %v85
      %1600 = vmatprep.subr.mxu0 %v88
      %1601 = vmatpush1.msra.mxu0 %v87
      %1602 = vmatprep.subr.mxu0 %v90
      %1603 = vmatpush1.msra.mxu0 %v89
      %1604 = vmatprep.subr.mxu0 %v92
      %1605 = vmatpush1.msra.mxu0 %v91
      %1606 = vmatprep.subr.mxu0 0.0
      %1607 = vmatpush1.msra.mxu0 0.0
      %1608 = vmatprep.subr.mxu0 0.0
      %1609 = vmatpush1.msra.mxu0 0.0
      %1610 = vmatprep.subr.mxu0 0.0
      %1611 = vmatpush1.msra.mxu0 0.0
      %1612 = vmatprep.subr.mxu0 0.0
      %1613 = vmatpush1.msra.mxu0 0.0
      %1614 = vmatprep.subr.mxu0 0.0
      %1615 = vmatpush1.msra.mxu0 0.0
      %1616 = vmatprep.subr.mxu0 0.0
      %1617 = vmatpush1.msra.mxu0 0.0
      %1618 = vmatprep.subr.mxu0 0.0
      %1619 = vmatpush1.msra.mxu0 0.0
      %1620 = vmatprep.subr.mxu0 0.0
      %1621 = vmatpush1.msra.mxu0 0.0
      %1622 = vmatprep.subr.mxu0 0.0
      %1623 = vmatpush1.msra.mxu0 0.0
      %1624 = vmatprep.subr.mxu0 0.0
      %1625 = vmatpush1.msra.mxu0 0.0
      %1626 = vmatprep.subr.mxu0 0.0
      %1627 = vmatpush1.msra.mxu0 0.0
      %1628 = vmatprep.subr.mxu0 0.0
      %1629 = vmatpush1.msra.mxu0 0.0
      %1630 = vmatprep.subr.mxu0 0.0
      %1631 = vmatpush1.msra.mxu0 0.0
      %1632 = vmatprep.subr.mxu0 0.0
      %1633 = vmatpush1.msra.mxu0 0.0
      %1634 = vmatprep.subr.mxu0 0.0
      %1635 = vmatpush1.msra.mxu0 0.0
      %1636 = vmatprep.subr.mxu0 0.0
      %1637 = vmatpush1.msra.mxu0 0.0
      %1638 = vmatprep.subr.mxu0 0.0
      %1639 = vmatpush1.msra.mxu0 0.0
      %1640 = vmatprep.subr.mxu0 0.0
      %1641 = vmatpush1.msra.mxu0 0.0
      %1642 = vmatprep.subr.mxu0 0.0
      %1643 = vmatpush1.msra.mxu0 0.0
      %1644 = vmatprep.subr.mxu0 0.0
      %1645 = vmatpush1.msra.mxu0 0.0
      %1646 = vmatprep.subr.mxu0 0.0
      %1647 = vmatpush1.msra.mxu0 0.0
      %1648 = vmatprep.subr.mxu0 0.0
      %1649 = vmatpush1.msra.mxu0 0.0
      %1650 = vmatprep.subr.mxu0 0.0
      %1651 = vmatpush1.msra.mxu0 0.0
      %1652 = vmatprep.subr.mxu0 0.0
      %1653 = vmatpush1.msra.mxu0 0.0
      %1654 = vmatprep.mubr.f32.mxu0 0.0
      %1655 = vmatmul.mubr.f32.gmra.mrb[0].mxu0 %v1588
      %v1656 = vpop.f32.mrb[0].mxu0
      %v1657 = vadd.f32 0.0, %v1656
      %v1658 = vpop.f32.mrb[0].mxu0
      %v1659 = vadd.f32 0.0, %v1658
      %1660 = vdwg.mxu0
      %v1661 = vadd.f32 %v1586, %v1657
      %v1662 = vxor.u32 %v1661, 2147483648
      %v1663 = vmul.f32 %v1662, 1.442695
      %v1664 = vpow.pop %v1663
      %v1665 = vadd.f32 %v1664, 1.0
      %v1666 = vrcp.pop %v1665
      %v1667 = vmul.f32 1.0, %v1666
      %v1668 = vadd.f32 %v1659, %v125
      %v1669 = vmul.f32 %v1667, %v1668
      %v1670 = vadd.f32 %v1587, %v1669
      %v1671 = vtanh.pop %v1670
      %v1672 = vsub.f32 1.0, %v1667
      %1674 = vrot.lane.b32.xlu0 %v1671, 64
      %v1675 = vpop.permute.xlu0 %1674
      %v1677 = vmul.f32 %v1672, %v1675
      %v1678 = vmul.f32 %v1667, %v1473
      %v1679 = vadd.f32 %v1677, %v1678
      %1681 = vrot.lane.b32.xlu0 %v1679, 64
      %v1682 = vpop.permute.xlu0 %1681
      %v1684 = vsel %vm137, %v1682, %v1570
      %1685 = vmatprep.subr.mxu0 %v94
      %1686 = vmatpush1.msra.mxu0 %v93
      %1687 = vmatprep.subr.mxu0 %v96
      %1688 = vmatpush1.msra.mxu0 %v95
      %1689 = vmatprep.subr.mxu0 %v98
      %1690 = vmatpush1.msra.mxu0 %v97
      %1691 = vmatprep.subr.mxu0 %v100
      %1692 = vmatpush1.msra.mxu0 %v99
      %1693 = vmatprep.subr.mxu0 %v102
      %1694 = vmatpush1.msra.mxu0 %v101
      %1695 = vmatprep.subr.mxu0 %v104
      %1696 = vmatpush1.msra.mxu0 %v103
      %1697 = vmatprep.subr.mxu0 %v106
      %1698 = vmatpush1.msra.mxu0 %v105
      %1699 = vmatprep.subr.mxu0 %v108
      %1700 = vmatpush1.msra.mxu0 %v107
      %1701 = vmatprep.subr.mxu0 %v110
      %1702 = vmatpush1.msra.mxu0 %v109
      %1703 = vmatprep.subr.mxu0 %v112
      %1704 = vmatpush1.msra.mxu0 %v111
      %1705 = vmatprep.subr.mxu0 %v114
      %1706 = vmatpush1.msra.mxu0 %v113
      %1707 = vmatprep.subr.mxu0 %v116
      %1708 = vmatpush1.msra.mxu0 %v115
      %1709 = vmatprep.subr.mxu0 %v118
      %1710 = vmatpush1.msra.mxu0 %v117
      %1711 = vmatprep.subr.mxu0 %v120
      %1712 = vmatpush1.msra.mxu0 %v119
      %1713 = vmatprep.subr.mxu0 %v122
      %1714 = vmatpush1.msra.mxu0 %v121
      %1715 = vmatprep.subr.mxu0 %v124
      %1716 = vmatpush1.msra.mxu0 %v123
      %1717 = vmatprep.subr.mxu0 0.0
      %1718 = vmatpush1.msra.mxu0 0.0
      %1719 = vmatprep.subr.mxu0 0.0
      %1720 = vmatpush1.msra.mxu0 0.0
      %1721 = vmatprep.subr.mxu0 0.0
      %1722 = vmatpush1.msra.mxu0 0.0
      %1723 = vmatprep.subr.mxu0 0.0
      %1724 = vmatpush1.msra.mxu0 0.0
      %1725 = vmatprep.subr.mxu0 0.0
      %1726 = vmatpush1.msra.mxu0 0.0
      %1727 = vmatprep.subr.mxu0 0.0
      %1728 = vmatpush1.msra.mxu0 0.0
      %1729 = vmatprep.subr.mxu0 0.0
      %1730 = vmatpush1.msra.mxu0 0.0
      %1731 = vmatprep.subr.mxu0 0.0
      %1732 = vmatpush1.msra.mxu0 0.0
      %1733 = vmatprep.subr.mxu0 0.0
      %1734 = vmatpush1.msra.mxu0 0.0
      %1735 = vmatprep.subr.mxu0 0.0
      %1736 = vmatpush1.msra.mxu0 0.0
      %1737 = vmatprep.subr.mxu0 0.0
      %1738 = vmatpush1.msra.mxu0 0.0
      %1739 = vmatprep.subr.mxu0 0.0
      %1740 = vmatpush1.msra.mxu0 0.0
      %1741 = vmatprep.subr.mxu0 0.0
      %1742 = vmatpush1.msra.mxu0 0.0
      %1743 = vmatprep.subr.mxu0 0.0
      %1744 = vmatpush1.msra.mxu0 0.0
      %1745 = vmatprep.subr.mxu0 0.0
      %1746 = vmatpush1.msra.mxu0 0.0
      %1747 = vmatprep.subr.mxu0 0.0
      %1748 = vmatpush1.msra.mxu0 0.0
      %1749 = vmatprep.mubr.f32.mxu0 0.0
      %1750 = vmatmul.mubr.f32.gmra.mrb[0].mxu0 %v1684
      %v1751 = vpop.f32.mrb[0].mxu0
      %v1752 = vadd.f32 %v126, %v1751
      %v1753 = vpop.f32.mrb[0].mxu0
      %v1754 = vadd.f32 %v127, %v1753
      %1755 = vdwg.mxu0
      %v1756 = vxor.u32 %v1752, 2147483648
      %v1757 = vmul.f32 %v1756, 1.442695
      %v1758 = vpow.pop %v1757
      %v1759 = vadd.f32 %v1758, 1.0
      %v1760 = vrcp.pop %v1759
      %v1761 = vmul.f32 1.0, %v1760
      %1763 = vrot.lane.b32.xlu0 %v1754, 64
      %v1764 = vpop.permute.xlu0 %1763
      %v1766 = vmul.f32 %v1761, %v1764
      %v1767 = vadd.f32 %v1754, %v1766
      %v1768 = vtanh.pop %v1767
      %v1769 = vsub.f32 1.0, %v1761
      %1771 = vrot.lane.b32.xlu0 %v1768, 64
      %v1772 = vpop.permute.xlu0 %1771
      %v1774 = vmul.f32 %v1769, %v1772
      %v1775 = vmul.f32 %v1761, %v1570
      %v1776 = vadd.f32 %v1774, %v1775
      %vm1777 = vcmp.gt.s32.totalorder %v130, 7
      %1779 = vrot.lane.b32.xlu0 %v1776, 64
      %v1780 = vpop.permute.xlu0 %1779
      %v1782 = vmax.f32 %v1582, %v1780
      %v1783 = vsel %vm1777, 1, 0
      %1784 = vset.pattern.permute.xlu0 0
      %1785 = vperm.xlu0 %1784, %v1783
      %v1786 = vpop.permute.xlu0 %1785
      %vm1787 = vcmp.eq.s32.totalorder %v1786, 1
      %v1788 = vsel %vm1787, %v1782, %v1582
      %v1789 = vadd.f32 %v1584, %v1780
      %v1790 = vsel %vm1787, %v1789, %v1584
      %1791 = vst.msk [vmem:[#allocation2] sm:$0xff] %vm137, %v1682
      %1792 = vst.msk [vmem:[#allocation3] sm:$0xff] %vm137, %v1780
      %1793 = vst.msk [vmem:[#allocation4] sm:$0xff] %vm137, %v1788
      %1794 = vst.msk [vmem:[#allocation5] sm:$0xff] %vm137, %v1790
    $region53: #{tpu_custom_call.1} parent=1 // pred_fallthru
      _
    // Predicated region
    $region54: #{tpu_custom_call.1} parent=1 // pred_check
      %p1795 = pneg %p62
    $region55: #{tpu_custom_call.1} parent=1 // pred_check_branch
      %1797 = sbr.rel (%p1795) target = $region57
    $region56: #{tpu_custom_call.1} parent=1 // pred_region
      %v1798 = vld [vmem:[#allocation5] sm:$0xff]
      %v1799 = vld [vmem:[%s7] sm:$0xff]
      %1801 = vset.pattern.permute.xlu0 0
      %1802 = vperm.xlu0 %1801, %v1799
      %v1803 = vpop.permute.xlu0 %1802
      %v1805 = vmul.f32 %v1798, %v1803
      %v1806 = vld [vmem:[#allocation4] sm:$0xff]
      %1808 = vrot.lane.b32.xlu0 %v1805, 64
      %v1809 = vpop.permute.xlu0 %1808
      %vm1811 = vcmask 523264
      %v1812 = vsel %vm1811, %v1806, %v1809
      %v1813 = vld [vmem:[%s8] sm:$0xff]
      %v1814 = vld [vmem:[%s8 + $0x8] sm:$0xff]
      %v1815 = vld [vmem:[%s8 + $0x10] sm:$0xff]
      %v1816 = vld [vmem:[%s8 + $0x18] sm:$0xff]
      %v1817 = vld [vmem:[%s8 + $0x20] sm:$0xff]
      %v1818 = vld [vmem:[%s8 + $0x28] sm:$0xff]
      %v1819 = vld [vmem:[%s8 + $0x30] sm:$0xff]
      %v1820 = vld [vmem:[%s8 + $0x38] sm:$0xff]
      %v1821 = vld [vmem:[%s8 + $0x40] sm:$0xff]
      %v1822 = vld [vmem:[%s8 + $0x48] sm:$0xff]
      %v1823 = vld [vmem:[%s8 + $0x50] sm:$0xff]
      %v1824 = vld [vmem:[%s8 + $0x58] sm:$0xff]
      %v1825 = vld [vmem:[%s8 + $0x60] sm:$0xff]
      %v1826 = vld [vmem:[%s8 + $0x68] sm:$0xff]
      %v1827 = vld [vmem:[%s8 + $0x70] sm:$0xff]
      %v1828 = vld [vmem:[%s8 + $0x78] sm:$0xff]
      %v1829 = vld [vmem:[%s9] sm:$0x1]
      %v1831 = vlaneseq
      %v1832 = vshrl.u32 %v1831, 7
      %v1833 = vsub.s32 0, %v1832
      %v1834 = vrot.slane %v1829, %v1833
      %1836 = vmatprep.subr.mxu0 0.0
      %1837 = vmatpush1.msra.mxu0 %v1813
      %1838 = vmatprep.subr.mxu0 0.0
      %1839 = vmatpush1.msra.mxu0 %v1814
      %1840 = vmatprep.subr.mxu0 0.0
      %1841 = vmatpush1.msra.mxu0 %v1815
      %1842 = vmatprep.subr.mxu0 0.0
      %1843 = vmatpush1.msra.mxu0 %v1816
      %1844 = vmatprep.subr.mxu0 0.0
      %1845 = vmatpush1.msra.mxu0 %v1817
      %1846 = vmatprep.subr.mxu0 0.0
      %1847 = vmatpush1.msra.mxu0 %v1818
      %1848 = vmatprep.subr.mxu0 0.0
      %1849 = vmatpush1.msra.mxu0 %v1819
      %1850 = vmatprep.subr.mxu0 0.0
      %1851 = vmatpush1.msra.mxu0 %v1820
      %1852 = vmatprep.subr.mxu0 0.0
      %1853 = vmatpush1.msra.mxu0 %v1821
      %1854 = vmatprep.subr.mxu0 0.0
      %1855 = vmatpush1.msra.mxu0 %v1822
      %1856 = vmatprep.subr.mxu0 0.0
      %1857 = vmatpush1.msra.mxu0 %v1823
      %1858 = vmatprep.subr.mxu0 0.0
      %1859 = vmatpush1.msra.mxu0 %v1824
      %1860 = vmatprep.subr.mxu0 0.0
      %1861 = vmatpush1.msra.mxu0 %v1825
      %1862 = vmatprep.subr.mxu0 0.0
      %1863 = vmatpush1.msra.mxu0 %v1826
      %1864 = vmatprep.subr.mxu0 0.0
      %1865 = vmatpush1.msra.mxu0 %v1827
      %1866 = vmatprep.subr.mxu0 0.0
      %1867 = vmatpush1.msra.mxu0 %v1828
      %1868 = vmatprep.subr.mxu0 0.0
      %1869 = vmatpush1.msra.mxu0 0.0
      %1870 = vmatprep.subr.mxu0 0.0
      %1871 = vmatpush1.msra.mxu0 0.0
      %1872 = vmatprep.subr.mxu0 0.0
      %1873 = vmatpush1.msra.mxu0 0.0
      %1874 = vmatprep.subr.mxu0 0.0
      %1875 = vmatpush1.msra.mxu0 0.0
      %1876 = vmatprep.subr.mxu0 0.0
      %1877 = vmatpush1.msra.mxu0 0.0
      %1878 = vmatprep.subr.mxu0 0.0
      %1879 = vmatpush1.msra.mxu0 0.0
      %1880 = vmatprep.subr.mxu0 0.0
      %1881 = vmatpush1.msra.mxu0 0.0
      %1882 = vmatprep.subr.mxu0 0.0
      %1883 = vmatpush1.msra.mxu0 0.0
      %1884 = vmatprep.subr.mxu0 0.0
      %1885 = vmatpush1.msra.mxu0 0.0
      %1886 = vmatprep.subr.mxu0 0.0
      %1887 = vmatpush1.msra.mxu0 0.0
      %1888 = vmatprep.subr.mxu0 0.0
      %1889 = vmatpush1.msra.mxu0 0.0
      %1890 = vmatprep.subr.mxu0 0.0
      %1891 = vmatpush1.msra.mxu0 0.0
      %1892 = vmatprep.subr.mxu0 0.0
      %1893 = vmatpush1.msra.mxu0 0.0
      %1894 = vmatprep.subr.mxu0 0.0
      %1895 = vmatpush1.msra.mxu0 0.0
      %1896 = vmatprep.subr.mxu0 0.0
      %1897 = vmatpush1.msra.mxu0 0.0
      %1898 = vmatprep.subr.mxu0 0.0
      %1899 = vmatpush1.msra.mxu0 0.0
      %1900 = vmatprep.mubr.f32.mxu0 0.0
      %1901 = vmatmul.mubr.f32.gmra.mrb[0].mxu0 %v1812
      %v1902 = vpop.f32.mrb[0].mxu0
      %v1903 = vadd.f32 %v1834, %v1902
      %v1904 = vpop.f32.mrb[0].mxu0
      %1905 = vdwg.mxu0
      %vm1906 = vcmask 23552
      %1907 = vst.msk [vmem:[%s10] sm:$0xff] %vm1906, %v1903
    $region57: #{tpu_custom_call.1} parent=1 // pred_fallthru
      _
    // Predicated region
    $region58: #{tpu_custom_call.1} parent=1 // pred_check
      _
    $region59: #{tpu_custom_call.1} parent=1 // pred_check_branch
      %1909 = sbr.rel (0) target = $region61
    $region60: #{tpu_custom_call.1} parent=1 // pred_region
      _
    $region61: #{tpu_custom_call.1} parent=1 // pred_fallthru
      _
    // Predicated region
    $region62: #{tpu_custom_call.1} parent=1 // pred_check
      _
    $region63: #{tpu_custom_call.1} parent=1 // pred_check_branch
      %1911 = sbr.rel (0) target = $region65
    $region64: #{tpu_custom_call.1} parent=1 // pred_region
      _
    $region65: #{tpu_custom_call.1} parent=1 // pred_fallthru
      _
    %1912 = vsyncpa [#allocation9], 1
    %1913 = vsyncpa [#allocation11], 1

</llo_original>
